<compile_context>
chip_gen: v6e
topology: v6e:2x2x1
jax: 0.10.0
libtpu: 0.0.40
codegen_flags: <defaults>
</compile_context>

<pallas_src>
import numpy as np
import jax
import jax.numpy as jnp
from jax.experimental import pallas as pl
from jax.experimental.pallas import tpu as pltpu

LANE = 128


def _round_up(x, m):
    return (x + m - 1) // m * m


def _choose_tiling(m):
    # tm=512 sits at the measured ~85%-of-roofline point; pad M (zero rows) instead of
    # falling back to tiny tiles, and make the block count even so v7x's two TensorCores
    # both get work on the "parallel" grid axis.
    tm = 512 if m >= 512 else max(8, _round_up(m, 8))
    mp = _round_up(m, 2 * tm)
    return tm, mp


def _vmem_limit_bytes():
    try:
        cap = int(pltpu.get_tpu_info().vmem_capacity_bytes)
    except Exception:
        cap = 64 << 20  # conservative: v7x per-TC physical VMEM
    return int(min(max(cap * 0.6, 32 << 20), 96 << 20))


# ----------------------------- Pallas kernels --------------------------------

def _conv_stats_kernel(a_ref, w_ref, p_ref):
    # MXU: (TM, K) bf16 @ (K, C) bf16 -> (TM, C) f32; emit only per-block BN partials.
    y = jnp.dot(a_ref[...], w_ref[...], preferred_element_type=jnp.float32)
    s = jnp.sum(y, axis=0, keepdims=True)
    ss = jnp.sum(y * y, axis=0, keepdims=True)
    zeros = jnp.zeros((6, y.shape[1]), jnp.float32)
    # row 0 = sum, row 1 = sum of squares, rows 2..7 zero; single store.
    p_ref[...] = jnp.concatenate([s, ss, zeros], axis=0)


def _conv_bn_relu_kernel(a_ref, w_ref, scale_ref, shift_ref, o_ref):
    # Recompute the (cheap, K small) matmul and fuse affine BN + ReLU + store.
    y = jnp.dot(a_ref[...], w_ref[...], preferred_element_type=jnp.float32)
    o_ref[...] = jnp.maximum(y * scale_ref[...] + shift_ref[...], 0.0)


def conv_stats(patches_bf16, wmat_bf16, tm):
    """Pass 1: conv matmul -> per-block channel sum / sum-of-squares partials only."""
    mp, k = patches_bf16.shape
    c = wmat_bf16.shape[1]
    nblk = mp // tm
    return pl.pallas_call(
        _conv_stats_kernel,
        out_shape=jax.ShapeDtypeStruct((nblk * 8, c), jnp.float32),
        grid_spec=pltpu.PrefetchScalarGridSpec(
            num_scalar_prefetch=0,
            grid=(nblk,),
            in_specs=[pl.BlockSpec((tm, k), lambda i: (i, 0)),
                      pl.BlockSpec((k, c), lambda i: (0, 0))],
            out_specs=pl.BlockSpec((8, c), lambda i: (i, 0)),
        ),
        compiler_params=pltpu.CompilerParams(
            dimension_semantics=("parallel",),
            vmem_limit_bytes=_vmem_limit_bytes()),
    )(patches_bf16, wmat_bf16)


def conv_bn_relu(patches_bf16, wmat_bf16, scale, shift, tm):
    """Pass 2: recompute conv matmul, fuse BN + ReLU, write unpadded (Mp, C) f32."""
    mp, k = patches_bf16.shape
    c = wmat_bf16.shape[1]
    nblk = mp // tm
    return pl.pallas_call(
        _conv_bn_relu_kernel,
        out_shape=jax.ShapeDtypeStruct((mp, c), jnp.float32),
        grid_spec=pltpu.PrefetchScalarGridSpec(
            num_scalar_prefetch=0,
            grid=(nblk,),
            in_specs=[pl.BlockSpec((tm, k), lambda i: (i, 0)),
                      pl.BlockSpec((k, c), lambda i: (0, 0)),
                      pl.BlockSpec((1, c), lambda i: (0, 0)),
                      pl.BlockSpec((1, c), lambda i: (0, 0))],
            out_specs=pl.BlockSpec((tm, c), lambda i: (i, 0)),
        ),
        compiler_params=pltpu.CompilerParams(
            dimension_semantics=("parallel",),
            vmem_limit_bytes=_vmem_limit_bytes()),
    )(patches_bf16, wmat_bf16, scale, shift)


# -------------------- glue: spherical sampling + im2col ----------------------

def sphere_sample_coords(H, W):
    """Gnomonic 3x3 tangent-plane sampling coords per equirectangular pixel.
    Returns yf, xf of shape (H, W, 3, 3), fractional pixel coords (numpy, trace-time)."""
    h = np.arange(H)
    w = np.arange(W)
    lat0 = (h + 0.5) / H * np.pi - np.pi / 2.0           # (H,)
    lon0 = (w + 0.5) / W * 2.0 * np.pi - np.pi           # (W,)
    d_lat = np.pi / H
    d_lon = 2.0 * np.pi / W
    ky, kx = np.meshgrid(np.arange(3) - 1, np.arange(3) - 1, indexing="ij")  # (3,3)
    px = np.tan(kx * d_lon)
    py = np.tan(ky * d_lat) / np.cos(kx * d_lon)
    rho = np.sqrt(px ** 2 + py ** 2)
    c = np.arctan(rho)
    sin_c, cos_c = np.sin(c), np.cos(c)

    lat0_g = lat0[:, None, None, None]                   # (H,1,1,1)
    lon0_g = lon0[None, :, None, None]                   # (1,W,1,1)
    px_g, py_g = px[None, None], py[None, None]          # (1,1,3,3)
    rho_g, sin_c_g, cos_c_g = rho[None, None], sin_c[None, None], cos_c[None, None]
    rho_safe = np.where(rho_g == 0, 1.0, rho_g)

    lat = np.where(
        rho_g == 0,
        lat0_g,
        np.arcsin(np.clip(cos_c_g * np.sin(lat0_g)
                          + py_g * sin_c_g * np.cos(lat0_g) / rho_safe, -1.0, 1.0)))
    lon = lon0_g + np.arctan2(px_g * sin_c_g,
                              rho_g * np.cos(lat0_g) * cos_c_g
                              - py_g * np.sin(lat0_g) * sin_c_g)

    yf = (lat + np.pi / 2.0) / np.pi * H - 0.5
    yf = np.broadcast_to(yf, (H, W, 3, 3)).astype(np.float32)
    xf = (((lon + np.pi) / (2.0 * np.pi) * W - 0.5) % W).astype(np.float32)
    return yf, xf


def im2col_sphere(x_nthwc, yf, xf):
    """Bilinear-sample the 3x3 spherical taps -> bf16 patches (NT*H*W, 9*C).
    Corners gathered from a bf16 copy of x (halves gather traffic); lerp in f32;
    the final bf16 convert fuses into the lerp fusion."""
    NT, H, W, C = x_nthwc.shape
    y0 = jnp.floor(yf).astype(jnp.int32)
    x0 = jnp.floor(xf).astype(jnp.int32)
    wy = (yf - y0.astype(jnp.float32))
    wx = (xf - x0.astype(jnp.float32))
    y0c = jnp.clip(y0, 0, H - 1)
    y1c = jnp.clip(y0 + 1, 0, H - 1)       # clamp at the poles
    x0w = jnp.mod(x0, W)
    x1w = jnp.mod(x0 + 1, W)               # wrap in longitude

    x_flat = x_nthwc.astype(jnp.bfloat16).reshape(NT, H * W, C)

    def gather(yi, xi):
        flat = (yi * W + xi).reshape(-1)
        return x_flat[:, flat, :].reshape(NT, H, W, 3, 3, C)

    g00, g01 = gather(y0c, x0w), gather(y0c, x1w)
    g10, g11 = gather(y1c, x0w), gather(y1c, x1w)
    wy_ = wy[None, ..., None]
    wx_ = wx[None, ..., None]
    patches = (g00 * (1 - wy_) * (1 - wx_) + g01 * (1 - wy_) * wx_
               + g10 * wy_ * (1 - wx_) + g11 * wy_ * wx_)
    return patches.reshape(NT * H * W, 3 * 3 * C).astype(jnp.bfloat16)


# ------------------------------ SphereBlock3D --------------------------------

@jax.jit
def sphere_block_3d(x, conv_w, bn_gamma, bn_beta):
    """x: (N, Cin, T, H, W) f32; conv_w: (Cout, Cin, 1, 3, 3); returns (N, Cout, T, H, W)."""
    eps = 1e-4
    N, Cin, T, H, W = x.shape
    Cout = conv_w.shape[0]
    K = 9 * Cin
    M = N * T * H * W
    tm, Mp = _choose_tiling(M)

    # Lane-dense channel padding only pays off when Cout is already >= ~128.
    Cp = _round_up(Cout, LANE) if Cout >= LANE else Cout

    yf, xf = sphere_sample_coords(H, W)
    x_nthwc = jnp.transpose(x, (0, 2, 3, 4, 1)).reshape(N * T, H, W, Cin)
    patches = im2col_sphere(x_nthwc, jnp.asarray(yf), jnp.asarray(xf))        # (M, K) bf16
    if Mp > M:
        patches = jnp.pad(patches, ((0, Mp - M), (0, 0)))                     # zero rows

    wmat = jnp.transpose(conv_w[:, :, 0], (2, 3, 1, 0)).reshape(K, Cout)
    if Cp != Cout:
        wmat = jnp.pad(wmat, ((0, 0), (0, Cp - Cout)))
    wmat = wmat.astype(jnp.bfloat16)

    # Pass 1: per-block BN partials (zero-padded rows contribute 0 to sum/sumsq).
    partials = conv_stats(patches, wmat, tm)                                  # (nblk*8, Cp)
    part = partials.reshape(Mp // tm, 8, Cp)
    s = jnp.sum(part[:, 0, :], axis=0)
    ss = jnp.sum(part[:, 1, :], axis=0)
    mean = s / M
    var = jnp.maximum(ss / M - mean * mean, 0.0)     # biased var (BN training mode), clamped
    gamma_p = jnp.pad(bn_gamma, (0, Cp - Cout)) if Cp != Cout else bn_gamma
    beta_p = jnp.pad(bn_beta, (0, Cp - Cout)) if Cp != Cout else bn_beta
    scale = gamma_p * jax.lax.rsqrt(var + eps)
    shift = beta_p - mean * scale

    # Pass 2: recompute matmul (K is small), fused BN + ReLU, unpadded-channel output.
    out = conv_bn_relu(patches, wmat, scale.reshape(1, Cp), shift.reshape(1, Cp), tm)  # (Mp, Cp)
    out = out[:M, :Cout]
    return jnp.transpose(out.reshape(N, T, H, W, Cout), (0, 4, 1, 2, 3))


# ----------------------------------- main -------------------------------------

if __name__ == "__main__":
    N, Cin, Cout, T, H, W = 2, 4, 8, 4, 8, 16   # M = N*T*H*W = 1024 -> 2 blocks of 512
    key = jax.random.PRNGKey(0)
    kx, kw, kg, kb = jax.random.split(key, 4)

    x = jax.random.normal(kx, (N, Cin, T, H, W), dtype=jnp.float32)
    conv_w = jax.random.normal(kw, (Cout, Cin, 1, 3, 3), dtype=jnp.float32) / np.sqrt(9 * Cin)
    bn_gamma = 1.0 + 0.1 * jax.random.normal(kg, (Cout,), dtype=jnp.float32)
    bn_beta = 0.1 * jax.random.normal(kb, (Cout,), dtype=jnp.float32)

    out = sphere_block_3d(x, conv_w, bn_gamma, bn_beta)
    out = jax.block_until_ready(out)

    # pure-JAX reference (same spherical sampling glue; matmul inputs bf16-rounded just
    # like the kernel's MXU path, f32 accumulation; BN training-mode stats + ReLU)
    yf, xf = sphere_sample_coords(H, W)
    x_nthwc = jnp.transpose(x, (0, 2, 3, 4, 1)).reshape(N * T, H, W, Cin)
    patches = im2col_sphere(x_nthwc, jnp.asarray(yf), jnp.asarray(xf))        # bf16
    wmat = jnp.transpose(conv_w[:, :, 0], (2, 3, 1, 0)).reshape(9 * Cin, Cout)
    a_ref = patches.astype(jnp.float32)
    w_ref = wmat.astype(jnp.bfloat16).astype(jnp.float32)
    conv_ref = jnp.dot(a_ref, w_ref, precision=jax.lax.Precision.HIGHEST)
    mean_ref = conv_ref.mean(axis=0)
    var_ref = conv_ref.var(axis=0)
    ref = jnp.maximum((conv_ref - mean_ref) / jnp.sqrt(var_ref + 1e-4) * bn_gamma + bn_beta, 0.0)
    ref = jnp.transpose(ref.reshape(N, T, H, W, Cout), (0, 4, 1, 2, 3))

    assert out.shape == (N, Cout, T, H, W)
    assert bool(jnp.all(jnp.isfinite(out)))
    assert np.allclose(np.asarray(out), np.asarray(ref), rtol=1e-2, atol=1e-2)
    print("KERNEL_OK")
</pallas_src>

<mosaic_0001>
module attributes {stable_mosaic.version = 11 : i64} {
  func.func @_conv_stats_kernel(%arg0: i32, %arg1: memref<512x36xbf16, #tpu.memory_space<vmem>>, %arg2: memref<36x8xbf16, #tpu.memory_space<vmem>>, %arg3: memref<8x8xf32, #tpu.memory_space<vmem>>) attributes {dimension_semantics = [#tpu.dimension_semantics<parallel>], iteration_bounds = array<i64: 2>, scalar_prefetch = 0 : i64, scratch_operands = 0 : i64, tpu.core_type = #tpu.core_type<tc>, window_params = [{transform_indices = @transform_0, window_bounds = array<i64: 512, 36>}, {pipeline_mode = #tpu.pipeline_mode<synchronous>, transform_indices = @transform_1, window_bounds = array<i64: 36, 8>}, {transform_indices = @transform_2, window_bounds = array<i64: 8, 8>}]} {
    %c0 = arith.constant 0 : index
    %c0_0 = arith.constant 0 : index
    %0 = vector.load %arg1[%c0, %c0_0] : memref<512x36xbf16, #tpu.memory_space<vmem>>, vector<512x36xbf16>
    %c0_1 = arith.constant 0 : index
    %c0_2 = arith.constant 0 : index
    %1 = vector.load %arg2[%c0_1, %c0_2] : memref<36x8xbf16, #tpu.memory_space<vmem>>, vector<36x8xbf16>
    %cst = arith.constant dense<0.000000e+00> : vector<512x8xf32>
    %2 = tpu.matmul %0, %1, %cst {dimension_numbers = #tpu.dot_dimension_numbers<[1], [0], [0], [1], [0, 0, 1, 1], [], []>} : vector<512x36xbf16>, vector<36x8xbf16>, vector<512x8xf32> -> vector<512x8xf32>
    %cst_3 = arith.constant dense<0.000000e+00> : vector<8xf32>
    %3 = vector.multi_reduction <add>, %2, %cst_3 [0] : vector<512x8xf32> to vector<8xf32>
    %4 = vector.shape_cast %3 : vector<8xf32> to vector<1x8xf32>
    %5 = arith.mulf %2, %2 : vector<512x8xf32>
    %cst_4 = arith.constant dense<0.000000e+00> : vector<8xf32>
    %6 = vector.multi_reduction <add>, %5, %cst_4 [0] : vector<512x8xf32> to vector<8xf32>
    %7 = vector.shape_cast %6 : vector<8xf32> to vector<1x8xf32>
    %cst_5 = arith.constant 0.000000e+00 : f32
    %8 = vector.broadcast %cst_5 : f32 to vector<6x8xf32>
    %9 = tpu.concatenate %4, %7, %8 in 0 : vector<1x8xf32>, vector<1x8xf32>, vector<6x8xf32> -> vector<8x8xf32>
    %c0_6 = arith.constant 0 : index
    %c0_7 = arith.constant 0 : index
    %10 = vector.load %arg3[%c0_6, %c0_7] : memref<8x8xf32, #tpu.memory_space<vmem>>, vector<8x8xf32>
    tpu.vector_store %arg3[%c0_6, %c0_7], %9 {strides = array<i32>} : memref<8x8xf32, #tpu.memory_space<vmem>>, vector<8x8xf32>,
    return
  }
  func.func @transform_0(%arg0: i32) -> (i32, i32) {
    %c0_i32 = arith.constant 0 : i32
    %c0_i32_0 = arith.constant 0 : i32
    return %arg0, %c0_i32 : i32, i32
  }
  func.func @transform_1(%arg0: i32) -> (i32, i32) {
    %c0_i32 = arith.constant 0 : i32
    %c0_i32_0 = arith.constant 0 : i32
    %c0_i32_1 = arith.constant 0 : i32
    return %c0_i32, %c0_i32_0 : i32, i32
  }
  func.func @transform_2(%arg0: i32) -> (i32, i32) {
    %c0_i32 = arith.constant 0 : i32
    %c0_i32_0 = arith.constant 0 : i32
    return %arg0, %c0_i32 : i32, i32
  }
}

module attributes {stable_mosaic.version = 11 : i64} {
  func.func @_conv_bn_relu_kernel(%arg0: i32, %arg1: memref<512x36xbf16, #tpu.memory_space<vmem>>, %arg2: memref<36x8xbf16, #tpu.memory_space<vmem>>, %arg3: memref<1x8xf32, #tpu.memory_space<vmem>>, %arg4: memref<1x8xf32, #tpu.memory_space<vmem>>, %arg5: memref<512x8xf32, #tpu.memory_space<vmem>>) attributes {dimension_semantics = [#tpu.dimension_semantics<parallel>], iteration_bounds = array<i64: 2>, scalar_prefetch = 0 : i64, scratch_operands = 0 : i64, tpu.core_type = #tpu.core_type<tc>, window_params = [{transform_indices = @transform_0, window_bounds = array<i64: 512, 36>}, {pipeline_mode = #tpu.pipeline_mode<synchronous>, transform_indices = @transform_1, window_bounds = array<i64: 36, 8>}, {pipeline_mode = #tpu.pipeline_mode<synchronous>, transform_indices = @transform_2, window_bounds = array<i64: 1, 8>}, {pipeline_mode = #tpu.pipeline_mode<synchronous>, transform_indices = @transform_3, window_bounds = array<i64: 1, 8>}, {transform_indices = @transform_4, window_bounds = array<i64: 512, 8>}]} {
    %c0 = arith.constant 0 : index
    %c0_0 = arith.constant 0 : index
    %0 = vector.load %arg1[%c0, %c0_0] : memref<512x36xbf16, #tpu.memory_space<vmem>>, vector<512x36xbf16>
    %c0_1 = arith.constant 0 : index
    %c0_2 = arith.constant 0 : index
    %1 = vector.load %arg2[%c0_1, %c0_2] : memref<36x8xbf16, #tpu.memory_space<vmem>>, vector<36x8xbf16>
    %cst = arith.constant dense<0.000000e+00> : vector<512x8xf32>
    %2 = tpu.matmul %0, %1, %cst {dimension_numbers = #tpu.dot_dimension_numbers<[1], [0], [0], [1], [0, 0, 1, 1], [], []>} : vector<512x36xbf16>, vector<36x8xbf16>, vector<512x8xf32> -> vector<512x8xf32>
    %c0_3 = arith.constant 0 : index
    %c0_4 = arith.constant 0 : index
    %3 = vector.load %arg3[%c0_3, %c0_4] : memref<1x8xf32, #tpu.memory_space<vmem>>, vector<1x8xf32>
    %4 = vector.broadcast %3 : vector<1x8xf32> to vector<512x8xf32>
    %5 = arith.mulf %2, %4 : vector<512x8xf32>
    %c0_5 = arith.constant 0 : index
    %c0_6 = arith.constant 0 : index
    %6 = vector.load %arg4[%c0_5, %c0_6] : memref<1x8xf32, #tpu.memory_space<vmem>>, vector<1x8xf32>
    %7 = vector.broadcast %6 : vector<1x8xf32> to vector<512x8xf32>
    %8 = arith.addf %5, %7 : vector<512x8xf32>
    %cst_7 = arith.constant 0.000000e+00 : f32
    %9 = vector.broadcast %cst_7 : f32 to vector<512x8xf32>
    %10 = arith.maximumf %8, %9 : vector<512x8xf32>
    %c0_8 = arith.constant 0 : index
    %c0_9 = arith.constant 0 : index
    %11 = vector.load %arg5[%c0_8, %c0_9] : memref<512x8xf32, #tpu.memory_space<vmem>>, vector<512x8xf32>
    tpu.vector_store %arg5[%c0_8, %c0_9], %10 {strides = array<i32>} : memref<512x8xf32, #tpu.memory_space<vmem>>, vector<512x8xf32>,
    return
  }
  func.func @transform_0(%arg0: i32) -> (i32, i32) {
    %c0_i32 = arith.constant 0 : i32
    %c0_i32_0 = arith.constant 0 : i32
    return %arg0, %c0_i32 : i32, i32
  }
  func.func @transform_1(%arg0: i32) -> (i32, i32) {
    %c0_i32 = arith.constant 0 : i32
    %c0_i32_0 = arith.constant 0 : i32
    %c0_i32_1 = arith.constant 0 : i32
    return %c0_i32, %c0_i32_0 : i32, i32
  }
  func.func @transform_2(%arg0: i32) -> (i32, i32) {
    %c0_i32 = arith.constant 0 : i32
    %c0_i32_0 = arith.constant 0 : i32
    %c0_i32_1 = arith.constant 0 : i32
    return %c0_i32, %c0_i32_0 : i32, i32
  }
  func.func @transform_3(%arg0: i32) -> (i32, i32) {
    %c0_i32 = arith.constant 0 : i32
    %c0_i32_0 = arith.constant 0 : i32
    %c0_i32_1 = arith.constant 0 : i32
    return %c0_i32, %c0_i32_0 : i32, i32
  }
  func.func @transform_4(%arg0: i32) -> (i32, i32) {
    %c0_i32 = arith.constant 0 : i32
    %c0_i32_0 = arith.constant 0 : i32
    return %arg0, %c0_i32 : i32, i32
  }
}

</mosaic_0001>

<llo_original>
// kernel: mul.8
$region0: #{mul.8}
  #allocation0 [shape = 's32[1]{0}', space=sflag, size = 0x4, scoped, tag = 'scoped memory for mul.8']
  %s0 = inlined_call_operand.vmem [shape: f32[1024,36], index: 0, kind: input, shape index: {}]
  %s1 = inlined_call_operand.vmem [shape: f32[1024,36], index: 1, kind: input, shape index: {}]
  %s2 = inlined_call_operand.vmem [shape: f32[1024,36], index: 2, kind: output, shape index: {}]
  %v3 = vld [vmem:[%s0] sm:$0xff]
  %v4 = vld [vmem:[%s1] sm:$0xff]
  %5 = xla_tuple %v3, %v4
  %6 = xla_tuple %5
  %v7 = vmul.f32 %v3, %v4
  %8 = xla_tuple %v7
  %9 = vst [vmem:[%s2] sm:$0xff] %v7
  %s10 = scalar_lea.vmem %s0, 64
  %v11 = vld [vmem:[%s10] sm:$0xff]
  %s12 = scalar_lea.vmem %s1, 64
  %v13 = vld [vmem:[%s12] sm:$0xff]
  %14 = xla_tuple %v11, %v13
  %15 = xla_tuple %14
  %v16 = vmul.f32 %v11, %v13
  %17 = xla_tuple %v16
  %s18 = scalar_lea.vmem %s2, 64
  %19 = vst [vmem:[%s18] sm:$0xff] %v16
  %s20 = scalar_lea.vmem %s0, 128
  %v21 = vld [vmem:[%s20] sm:$0xff]
  %s22 = scalar_lea.vmem %s1, 128
  %v23 = vld [vmem:[%s22] sm:$0xff]
  %24 = xla_tuple %v21, %v23
  %25 = xla_tuple %24
  %v26 = vmul.f32 %v21, %v23
  %27 = xla_tuple %v26
  %s28 = scalar_lea.vmem %s2, 128
  %29 = vst [vmem:[%s28] sm:$0xff] %v26
  %s30 = scalar_lea.vmem %s0, 192
  %v31 = vld [vmem:[%s30] sm:$0xff]
  %s32 = scalar_lea.vmem %s1, 192
  %v33 = vld [vmem:[%s32] sm:$0xff]
  %34 = xla_tuple %v31, %v33
  %35 = xla_tuple %34
  %v36 = vmul.f32 %v31, %v33
  %37 = xla_tuple %v36
  %s38 = scalar_lea.vmem %s2, 192
  %39 = vst [vmem:[%s38] sm:$0xff] %v36
  %s40 = scalar_lea.vmem %s0, 256
  %v41 = vld [vmem:[%s40] sm:$0xff]
  %s42 = scalar_lea.vmem %s1, 256
  %v43 = vld [vmem:[%s42] sm:$0xff]
  %44 = xla_tuple %v41, %v43
  %45 = xla_tuple %44
  %v46 = vmul.f32 %v41, %v43
  %47 = xla_tuple %v46
  %s48 = scalar_lea.vmem %s2, 256
  %49 = vst [vmem:[%s48] sm:$0xff] %v46
  %s50 = scalar_lea.vmem %s0, 8
  %v51 = vld [vmem:[%s50] sm:$0xff]
  %s52 = scalar_lea.vmem %s1, 8
  %v53 = vld [vmem:[%s52] sm:$0xff]
  %54 = xla_tuple %v51, %v53
  %55 = xla_tuple %54
  %v56 = vmul.f32 %v51, %v53
  %57 = xla_tuple %v56
  %s58 = scalar_lea.vmem %s2, 8
  %59 = vst [vmem:[%s58] sm:$0xff] %v56
  %s60 = scalar_lea.vmem %s0, 72
  %v61 = vld [vmem:[%s60] sm:$0xff]
  %s62 = scalar_lea.vmem %s1, 72
  %v63 = vld [vmem:[%s62] sm:$0xff]
  %64 = xla_tuple %v61, %v63
  %65 = xla_tuple %64
  %v66 = vmul.f32 %v61, %v63
  %67 = xla_tuple %v66
  %s68 = scalar_lea.vmem %s2, 72
  %69 = vst [vmem:[%s68] sm:$0xff] %v66
  %s70 = scalar_lea.vmem %s0, 136
  %v71 = vld [vmem:[%s70] sm:$0xff]
  %s72 = scalar_lea.vmem %s1, 136
  %v73 = vld [vmem:[%s72] sm:$0xff]
  %74 = xla_tuple %v71, %v73
  %75 = xla_tuple %74
  %v76 = vmul.f32 %v71, %v73
  %77 = xla_tuple %v76
  %s78 = scalar_lea.vmem %s2, 136
  %79 = vst [vmem:[%s78] sm:$0xff] %v76
  %s80 = scalar_lea.vmem %s0, 200
  %v81 = vld [vmem:[%s80] sm:$0xff]
  %s82 = scalar_lea.vmem %s1, 200
  %v83 = vld [vmem:[%s82] sm:$0xff]
  %84 = xla_tuple %v81, %v83
  %85 = xla_tuple %84
  %v86 = vmul.f32 %v81, %v83
  %87 = xla_tuple %v86
  %s88 = scalar_lea.vmem %s2, 200
  %89 = vst [vmem:[%s88] sm:$0xff] %v86
  %s90 = scalar_lea.vmem %s0, 264
  %v91 = vld [vmem:[%s90] sm:$0xff]
  %s92 = scalar_lea.vmem %s1, 264
  %v93 = vld [vmem:[%s92] sm:$0xff]
  %94 = xla_tuple %v91, %v93
  %95 = xla_tuple %94
  %v96 = vmul.f32 %v91, %v93
  %97 = xla_tuple %v96
  %s98 = scalar_lea.vmem %s2, 264
  %99 = vst [vmem:[%s98] sm:$0xff] %v96
  %s100 = scalar_lea.vmem %s0, 16
  %v101 = vld [vmem:[%s100] sm:$0xff]
  %s102 = scalar_lea.vmem %s1, 16
  %v103 = vld [vmem:[%s102] sm:$0xff]
  %104 = xla_tuple %v101, %v103
  %105 = xla_tuple %104
  %v106 = vmul.f32 %v101, %v103
  %107 = xla_tuple %v106
  %s108 = scalar_lea.vmem %s2, 16
  %109 = vst [vmem:[%s108] sm:$0xff] %v106
  %s110 = scalar_lea.vmem %s0, 80
  %v111 = vld [vmem:[%s110] sm:$0xff]
  %s112 = scalar_lea.vmem %s1, 80
  %v113 = vld [vmem:[%s112] sm:$0xff]
  %114 = xla_tuple %v111, %v113
  %115 = xla_tuple %114
  %v116 = vmul.f32 %v111, %v113
  %117 = xla_tuple %v116
  %s118 = scalar_lea.vmem %s2, 80
  %119 = vst [vmem:[%s118] sm:$0xff] %v116
  %s120 = scalar_lea.vmem %s0, 144
  %v121 = vld [vmem:[%s120] sm:$0xff]
  %s122 = scalar_lea.vmem %s1, 144
  %v123 = vld [vmem:[%s122] sm:$0xff]
  %124 = xla_tuple %v121, %v123
  %125 = xla_tuple %124
  %v126 = vmul.f32 %v121, %v123
  %127 = xla_tuple %v126
  %s128 = scalar_lea.vmem %s2, 144
  %129 = vst [vmem:[%s128] sm:$0xff] %v126
  %s130 = scalar_lea.vmem %s0, 208
  %v131 = vld [vmem:[%s130] sm:$0xff]
  %s132 = scalar_lea.vmem %s1, 208
  %v133 = vld [vmem:[%s132] sm:$0xff]
  %134 = xla_tuple %v131, %v133
  %135 = xla_tuple %134
  %v136 = vmul.f32 %v131, %v133
  %137 = xla_tuple %v136
  %s138 = scalar_lea.vmem %s2, 208
  %139 = vst [vmem:[%s138] sm:$0xff] %v136
  %s140 = scalar_lea.vmem %s0, 272
  %v141 = vld [vmem:[%s140] sm:$0xff]
  %s142 = scalar_lea.vmem %s1, 272
  %v143 = vld [vmem:[%s142] sm:$0xff]
  %144 = xla_tuple %v141, %v143
  %145 = xla_tuple %144
  %v146 = vmul.f32 %v141, %v143
  %147 = xla_tuple %v146
  %s148 = scalar_lea.vmem %s2, 272
  %149 = vst [vmem:[%s148] sm:$0xff] %v146
  %s150 = scalar_lea.vmem %s0, 24
  %v151 = vld [vmem:[%s150] sm:$0xff]
  %s152 = scalar_lea.vmem %s1, 24
  %v153 = vld [vmem:[%s152] sm:$0xff]
  %154 = xla_tuple %v151, %v153
  %155 = xla_tuple %154
  %v156 = vmul.f32 %v151, %v153
  %157 = xla_tuple %v156
  %s158 = scalar_lea.vmem %s2, 24
  %159 = vst [vmem:[%s158] sm:$0xff] %v156
  %s160 = scalar_lea.vmem %s0, 88
  %v161 = vld [vmem:[%s160] sm:$0xff]
  %s162 = scalar_lea.vmem %s1, 88
  %v163 = vld [vmem:[%s162] sm:$0xff]
  %164 = xla_tuple %v161, %v163
  %165 = xla_tuple %164
  %v166 = vmul.f32 %v161, %v163
  %167 = xla_tuple %v166
  %s168 = scalar_lea.vmem %s2, 88
  %169 = vst [vmem:[%s168] sm:$0xff] %v166
  %s170 = scalar_lea.vmem %s0, 152
  %v171 = vld [vmem:[%s170] sm:$0xff]
  %s172 = scalar_lea.vmem %s1, 152
  %v173 = vld [vmem:[%s172] sm:$0xff]
  %174 = xla_tuple %v171, %v173
  %175 = xla_tuple %174
  %v176 = vmul.f32 %v171, %v173
  %177 = xla_tuple %v176
  %s178 = scalar_lea.vmem %s2, 152
  %179 = vst [vmem:[%s178] sm:$0xff] %v176
  %s180 = scalar_lea.vmem %s0, 216
  %v181 = vld [vmem:[%s180] sm:$0xff]
  %s182 = scalar_lea.vmem %s1, 216
  %v183 = vld [vmem:[%s182] sm:$0xff]
  %184 = xla_tuple %v181, %v183
  %185 = xla_tuple %184
  %v186 = vmul.f32 %v181, %v183
  %187 = xla_tuple %v186
  %s188 = scalar_lea.vmem %s2, 216
  %189 = vst [vmem:[%s188] sm:$0xff] %v186
  %s190 = scalar_lea.vmem %s0, 280
  %v191 = vld [vmem:[%s190] sm:$0xff]
  %s192 = scalar_lea.vmem %s1, 280
  %v193 = vld [vmem:[%s192] sm:$0xff]
  %194 = xla_tuple %v191, %v193
  %195 = xla_tuple %194
  %v196 = vmul.f32 %v191, %v193
  %197 = xla_tuple %v196
  %s198 = scalar_lea.vmem %s2, 280
  %199 = vst [vmem:[%s198] sm:$0xff] %v196
  %s200 = scalar_lea.vmem %s0, 32
  %v201 = vld [vmem:[%s200] sm:$0xff]
  %s202 = scalar_lea.vmem %s1, 32
  %v203 = vld [vmem:[%s202] sm:$0xff]
  %204 = xla_tuple %v201, %v203
  %205 = xla_tuple %204
  %v206 = vmul.f32 %v201, %v203
  %207 = xla_tuple %v206
  %s208 = scalar_lea.vmem %s2, 32
  %209 = vst [vmem:[%s208] sm:$0xff] %v206
  %s210 = scalar_lea.vmem %s0, 96
  %v211 = vld [vmem:[%s210] sm:$0xff]
  %s212 = scalar_lea.vmem %s1, 96
  %v213 = vld [vmem:[%s212] sm:$0xff]
  %214 = xla_tuple %v211, %v213
  %215 = xla_tuple %214
  %v216 = vmul.f32 %v211, %v213
  %217 = xla_tuple %v216
  %s218 = scalar_lea.vmem %s2, 96
  %219 = vst [vmem:[%s218] sm:$0xff] %v216
  %s220 = scalar_lea.vmem %s0, 160
  %v221 = vld [vmem:[%s220] sm:$0xff]
  %s222 = scalar_lea.vmem %s1, 160
  %v223 = vld [vmem:[%s222] sm:$0xff]
  %224 = xla_tuple %v221, %v223
  %225 = xla_tuple %224
  %v226 = vmul.f32 %v221, %v223
  %227 = xla_tuple %v226
  %s228 = scalar_lea.vmem %s2, 160
  %229 = vst [vmem:[%s228] sm:$0xff] %v226
  %s230 = scalar_lea.vmem %s0, 224
  %v231 = vld [vmem:[%s230] sm:$0xff]
  %s232 = scalar_lea.vmem %s1, 224
  %v233 = vld [vmem:[%s232] sm:$0xff]
  %234 = xla_tuple %v231, %v233
  %235 = xla_tuple %234
  %v236 = vmul.f32 %v231, %v233
  %237 = xla_tuple %v236
  %s238 = scalar_lea.vmem %s2, 224
  %239 = vst [vmem:[%s238] sm:$0xff] %v236
  %s240 = scalar_lea.vmem %s0, 288
  %v241 = vld [vmem:[%s240] sm:$0xff]
  %s242 = scalar_lea.vmem %s1, 288
  %v243 = vld [vmem:[%s242] sm:$0xff]
  %244 = xla_tuple %v241, %v243
  %245 = xla_tuple %244
  %v246 = vmul.f32 %v241, %v243
  %247 = xla_tuple %v246
  %s248 = scalar_lea.vmem %s2, 288
  %249 = vst [vmem:[%s248] sm:$0xff] %v246
  %s250 = scalar_lea.vmem %s0, 40
  %v251 = vld [vmem:[%s250] sm:$0xff]
  %s252 = scalar_lea.vmem %s1, 40
  %v253 = vld [vmem:[%s252] sm:$0xff]
  %254 = xla_tuple %v251, %v253
  %255 = xla_tuple %254
  %v256 = vmul.f32 %v251, %v253
  %257 = xla_tuple %v256
  %s258 = scalar_lea.vmem %s2, 40
  %259 = vst [vmem:[%s258] sm:$0xff] %v256
  %s260 = scalar_lea.vmem %s0, 104
  %v261 = vld [vmem:[%s260] sm:$0xff]
  %s262 = scalar_lea.vmem %s1, 104
  %v263 = vld [vmem:[%s262] sm:$0xff]
  %264 = xla_tuple %v261, %v263
  %265 = xla_tuple %264
  %v266 = vmul.f32 %v261, %v263
  %267 = xla_tuple %v266
  %s268 = scalar_lea.vmem %s2, 104
  %269 = vst [vmem:[%s268] sm:$0xff] %v266
  %s270 = scalar_lea.vmem %s0, 168
  %v271 = vld [vmem:[%s270] sm:$0xff]
  %s272 = scalar_lea.vmem %s1, 168
  %v273 = vld [vmem:[%s272] sm:$0xff]
  %274 = xla_tuple %v271, %v273
  %275 = xla_tuple %274
  %v276 = vmul.f32 %v271, %v273
  %277 = xla_tuple %v276
  %s278 = scalar_lea.vmem %s2, 168
  %279 = vst [vmem:[%s278] sm:$0xff] %v276
  %s280 = scalar_lea.vmem %s0, 232
  %v281 = vld [vmem:[%s280] sm:$0xff]
  %s282 = scalar_lea.vmem %s1, 232
  %v283 = vld [vmem:[%s282] sm:$0xff]
  %284 = xla_tuple %v281, %v283
  %285 = xla_tuple %284
  %v286 = vmul.f32 %v281, %v283
  %287 = xla_tuple %v286
  %s288 = scalar_lea.vmem %s2, 232
  %289 = vst [vmem:[%s288] sm:$0xff] %v286
  %s290 = scalar_lea.vmem %s0, 296
  %v291 = vld [vmem:[%s290] sm:$0xff]
  %s292 = scalar_lea.vmem %s1, 296
  %v293 = vld [vmem:[%s292] sm:$0xff]
  %294 = xla_tuple %v291, %v293
  %295 = xla_tuple %294
  %v296 = vmul.f32 %v291, %v293
  %297 = xla_tuple %v296
  %s298 = scalar_lea.vmem %s2, 296
  %299 = vst [vmem:[%s298] sm:$0xff] %v296
  %s300 = scalar_lea.vmem %s0, 48
  %v301 = vld [vmem:[%s300] sm:$0xff]
  %s302 = scalar_lea.vmem %s1, 48
  %v303 = vld [vmem:[%s302] sm:$0xff]
  %304 = xla_tuple %v301, %v303
  %305 = xla_tuple %304
  %v306 = vmul.f32 %v301, %v303
  %307 = xla_tuple %v306
  %s308 = scalar_lea.vmem %s2, 48
  %309 = vst [vmem:[%s308] sm:$0xff] %v306
  %s310 = scalar_lea.vmem %s0, 112
  %v311 = vld [vmem:[%s310] sm:$0xff]
  %s312 = scalar_lea.vmem %s1, 112
  %v313 = vld [vmem:[%s312] sm:$0xff]
  %314 = xla_tuple %v311, %v313
  %315 = xla_tuple %314
  %v316 = vmul.f32 %v311, %v313
  %317 = xla_tuple %v316
  %s318 = scalar_lea.vmem %s2, 112
  %319 = vst [vmem:[%s318] sm:$0xff] %v316
  %s320 = scalar_lea.vmem %s0, 176
  %v321 = vld [vmem:[%s320] sm:$0xff]
  %s322 = scalar_lea.vmem %s1, 176
  %v323 = vld [vmem:[%s322] sm:$0xff]
  %324 = xla_tuple %v321, %v323
  %325 = xla_tuple %324
  %v326 = vmul.f32 %v321, %v323
  %327 = xla_tuple %v326
  %s328 = scalar_lea.vmem %s2, 176
  %329 = vst [vmem:[%s328] sm:$0xff] %v326
  %s330 = scalar_lea.vmem %s0, 240
  %v331 = vld [vmem:[%s330] sm:$0xff]
  %s332 = scalar_lea.vmem %s1, 240
  %v333 = vld [vmem:[%s332] sm:$0xff]
  %334 = xla_tuple %v331, %v333
  %335 = xla_tuple %334
  %v336 = vmul.f32 %v331, %v333
  %337 = xla_tuple %v336
  %s338 = scalar_lea.vmem %s2, 240
  %339 = vst [vmem:[%s338] sm:$0xff] %v336
  %s340 = scalar_lea.vmem %s0, 304
  %v341 = vld [vmem:[%s340] sm:$0xff]
  %s342 = scalar_lea.vmem %s1, 304
  %v343 = vld [vmem:[%s342] sm:$0xff]
  %344 = xla_tuple %v341, %v343
  %345 = xla_tuple %344
  %v346 = vmul.f32 %v341, %v343
  %347 = xla_tuple %v346
  %s348 = scalar_lea.vmem %s2, 304
  %349 = vst [vmem:[%s348] sm:$0xff] %v346
  %s350 = scalar_lea.vmem %s0, 56
  %v351 = vld [vmem:[%s350] sm:$0xff]
  %s352 = scalar_lea.vmem %s1, 56
  %v353 = vld [vmem:[%s352] sm:$0xff]
  %354 = xla_tuple %v351, %v353
  %355 = xla_tuple %354
  %v356 = vmul.f32 %v351, %v353
  %357 = xla_tuple %v356
  %s358 = scalar_lea.vmem %s2, 56
  %359 = vst [vmem:[%s358] sm:$0xff] %v356
  %s360 = scalar_lea.vmem %s0, 120
  %v361 = vld [vmem:[%s360] sm:$0xff]
  %s362 = scalar_lea.vmem %s1, 120
  %v363 = vld [vmem:[%s362] sm:$0xff]
  %364 = xla_tuple %v361, %v363
  %365 = xla_tuple %364
  %v366 = vmul.f32 %v361, %v363
  %367 = xla_tuple %v366
  %s368 = scalar_lea.vmem %s2, 120
  %369 = vst [vmem:[%s368] sm:$0xff] %v366
  %s370 = scalar_lea.vmem %s0, 184
  %v371 = vld [vmem:[%s370] sm:$0xff]
  %s372 = scalar_lea.vmem %s1, 184
  %v373 = vld [vmem:[%s372] sm:$0xff]
  %374 = xla_tuple %v371, %v373
  %375 = xla_tuple %374
  %v376 = vmul.f32 %v371, %v373
  %377 = xla_tuple %v376
  %s378 = scalar_lea.vmem %s2, 184
  %379 = vst [vmem:[%s378] sm:$0xff] %v376
  %s380 = scalar_lea.vmem %s0, 248
  %v381 = vld [vmem:[%s380] sm:$0xff]
  %s382 = scalar_lea.vmem %s1, 248
  %v383 = vld [vmem:[%s382] sm:$0xff]
  %384 = xla_tuple %v381, %v383
  %385 = xla_tuple %384
  %v386 = vmul.f32 %v381, %v383
  %387 = xla_tuple %v386
  %s388 = scalar_lea.vmem %s2, 248
  %389 = vst [vmem:[%s388] sm:$0xff] %v386
  %s390 = scalar_lea.vmem %s0, 312
  %v391 = vld [vmem:[%s390] sm:$0xff]
  %s392 = scalar_lea.vmem %s1, 312
  %v393 = vld [vmem:[%s392] sm:$0xff]
  %394 = xla_tuple %v391, %v393
  %395 = xla_tuple %394
  %v396 = vmul.f32 %v391, %v393
  %397 = xla_tuple %v396
  %s398 = scalar_lea.vmem %s2, 312
  %399 = vst [vmem:[%s398] sm:$0xff] %v396

// kernel: sphere_block_3d.2
$region0: #{sphere_block_3d.2}
  #allocation0 [shape = 'u32[]', space=smem, size = 0x4, offset = 0x4, fixed_abs, tag = 'smem constant byte address 0x4 - core index']
  #allocation1 [shape = 'u32[144,128]{1,0:T(1,128)}', space=vmem, size = 0x12000, scoped, tag = 'internal scratch']
  %s0 = inlined_call_operand.vmem [shape: bf16[1024,36], index: 0, kind: input, shape index: {}]
  %s1 = inlined_call_operand.vmem [shape: bf16[36,8], index: 1, kind: input, shape index: {}]
  %s2 = inlined_call_operand.vmem [shape: f32[16,8], index: 2, kind: output, shape index: {}]
  %s3 = sld [smem:[#allocation0]]
  $region41: #{sphere_block_3d.2} parent=0
    _
  %s5 = ssub.s32 1, %s3
  %s6 = scalar_select 0, %s5, %s3
  loop: start=0, step=1, limit=4
  $region2: #{sphere_block_3d.2} parent=0 // loop_pre_header
    _
  $region3: #{sphere_block_3d.2} parent=0 // loop_header
    %s8 = sphi 0, %s12
    %p9 = scmp.ge.s32.totalorder %s8, 4
    %s18 = sphi 0, %s20
    %s21 = sphi 0, %s18
    %s22 = sphi 0, %s21
    %s38 = sphi 0, %s22
    %s42 = sphi 0, %s42
    %s44 = sphi 0, %s42
    %s45 = sphi 0, %s44
    %s59 = sphi 0, %s45
    %s65 = sphi 0, %s67
    %s68 = sphi 0, %s65
    %s69 = sphi 0, %s68
    %s85 = sphi 0, %s69
  $region4: #{sphere_block_3d.2} parent=0 // loop_header_branch
    %11 = sbr.rel (%p9) target = $region8
  $region5: #{sphere_block_3d.2} parent=0 // loop_body
    %s13 = ssub.s32 %s8, 1
    %s14 = ssub.s32 %s8, 2
    %s15 = sadd.s32 %s8, 1
    %s16 = ssub.s32 %s8, %s15
    %p17 = scmp.eq.s32.totalorder %s16, 0
    %s19 = sadd.s32 %s18, 1
    %s20 = scalar_select %p17, %s18, %s19
    %p23 = pneg %p17
    %p24 = scmp.eq.s32.totalorder %s8, 1
    %p25 = por %p23, %p24
    %p26 = scmp.ne.s32.totalorder %s18, %s21
    %p27 = scmp.eq.s32.totalorder %s8, 0
    %p28 = por %p26, %p27
    %p29 = scmp.ne.s32.totalorder %s18, %s21
    %p30 = scmp.eq.s32.totalorder %s13, 1
    %p31 = por %p29, %p30
    %p32 = scmp.ne.s32.totalorder %s21, %s22
    %p33 = scmp.eq.s32.totalorder %s13, 0
    %p34 = por %p32, %p33
    %p35 = scmp.ne.s32.totalorder %s21, %s22
    %p36 = scmp.eq.s32.totalorder %s14, 1
    %p37 = por %p35, %p36
    %p39 = scmp.ne.s32.totalorder %s22, %s38
    %p40 = scmp.eq.s32.totalorder %s14, 0
    %p41 = por %p39, %p40
    %s43 = sadd.s32 %s42, 1
    %p46 = scmp.eq.s32.totalorder %s8, 1
    %p47 = scmp.ne.s32.totalorder %s42, %s44
    %p48 = scmp.eq.s32.totalorder %s8, 0
    %p49 = por %p47, %p48
    %p50 = scmp.ne.s32.totalorder %s42, %s44
    %p51 = scmp.eq.s32.totalorder %s13, 1
    %p52 = por %p50, %p51
    %p53 = scmp.ne.s32.totalorder %s44, %s45
    %p54 = scmp.eq.s32.totalorder %s13, 0
    %p55 = por %p53, %p54
    %p56 = scmp.ne.s32.totalorder %s44, %s45
    %p57 = scmp.eq.s32.totalorder %s14, 1
    %p58 = por %p56, %p57
    %p60 = scmp.ne.s32.totalorder %s45, %s59
    %p61 = scmp.eq.s32.totalorder %s14, 0
    %p62 = por %p60, %p61
    %s63 = ssub.s32 %s8, %s15
    %p64 = scmp.eq.s32.totalorder %s63, 0
    %s66 = sadd.s32 %s65, 1
    %s67 = scalar_select %p64, %s65, %s66
    %p70 = pneg %p64
    %p71 = scmp.eq.s32.totalorder %s8, 1
    %p72 = por %p70, %p71
    %p73 = scmp.ne.s32.totalorder %s65, %s68
    %p74 = scmp.eq.s32.totalorder %s8, 0
    %p75 = por %p73, %p74
    %p76 = scmp.ne.s32.totalorder %s65, %s68
    %p77 = scmp.eq.s32.totalorder %s13, 1
    %p78 = por %p76, %p77
    %p79 = scmp.ne.s32.totalorder %s68, %s69
    %p80 = scmp.eq.s32.totalorder %s13, 0
    %p81 = por %p79, %p80
    %p82 = scmp.ne.s32.totalorder %s68, %s69
    %p83 = scmp.eq.s32.totalorder %s14, 1
    %p84 = por %p82, %p83
    %p86 = scmp.ne.s32.totalorder %s69, %s85
    %p87 = scmp.eq.s32.totalorder %s14, 0
    %p88 = por %p86, %p87
    %p89 = scmp.le.s32.totalorder 1, %s8
    %p90 = scmp.lt.s32.totalorder %s8, 3
    %p91 = pnand %p89, %p90
    %p92 = pneg %p91
    // Predicated region
    $region9: #{sphere_block_3d.2} parent=5 // pred_check
      _
    $region10: #{sphere_block_3d.2} parent=5 // pred_check_branch
      %94 = sbr.rel (%p91) target = $region12
    $region11: #{sphere_block_3d.2} parent=5 // pred_region
      %s95 = ssub.s32 %s8, 1
      // Predicated region
      $region13: #{sphere_block_3d.2} parent=11 // pred_check
        %p96 = pneg %p55
      $region14: #{sphere_block_3d.2} parent=11 // pred_check_branch
        %98 = sbr.rel (%p96) target = $region16
      $region15: #{sphere_block_3d.2} parent=11 // pred_region
        _
      $region16: #{sphere_block_3d.2} parent=11 // pred_fallthru
        _
    $region12: #{sphere_block_3d.2} parent=5 // pred_fallthru
      _
    %p99 = scmp.lt.s32.totalorder %s8, 2
    // Predicated region
    $region17: #{sphere_block_3d.2} parent=5 // pred_check
      %p100 = pneg %p99
    $region18: #{sphere_block_3d.2} parent=5 // pred_check_branch
      %102 = sbr.rel (%p100) target = $region20
    $region19: #{sphere_block_3d.2} parent=5 // pred_region
      // Predicated region
      $region21: #{sphere_block_3d.2} parent=19 // pred_check
        %p103 = pneg %p28
      $region22: #{sphere_block_3d.2} parent=19 // pred_check_branch
        %105 = sbr.rel (%p103) target = $region24
      $region23: #{sphere_block_3d.2} parent=19 // pred_region
        %s106 = smul.u32 64, %s8
        %p107 = scmp.lt.s32.totalorder %s106, 127
        %s108 = scalar_select %p107, %s106, 127
        %s109 = smul.addr %s108, 4
        %s110 = scalar_lea.vmem %s0, %s109
        %s111 = smul.u32 64, %s8
      $region24: #{sphere_block_3d.2} parent=19 // pred_fallthru
        _
    $region20: #{sphere_block_3d.2} parent=5 // pred_fallthru
      _
    %p112 = scmp.le.s32.totalorder 1, %s8
    %p113 = scmp.lt.s32.totalorder %s8, 3
    %p114 = pnand %p112, %p113
    %p115 = pneg %p114
    // Predicated region
    $region25: #{sphere_block_3d.2} parent=5 // pred_check
      _
    $region26: #{sphere_block_3d.2} parent=5 // pred_check_branch
      %117 = sbr.rel (%p114) target = $region28
    $region27: #{sphere_block_3d.2} parent=5 // pred_region
      %s118 = ssub.s32 %s8, 1
      %s119 = smul.u32 64, %s13
      %p120 = scmp.lt.s32.totalorder %s119, 127
      %s121 = scalar_select %p120, %s119, 127
      %s122 = smul.addr %s121, 4
      %s123 = scalar_lea.vmem %s0, %s122
      %p124 = pneg %p34
      %p125 = pneg %p31
      %p126 = pneg %p55
      %p127 = pneg %p52
      %p128 = pneg %p81
      %p129 = pneg %p78
      %p130 = scmp.lt.s32.totalorder %s13, 1
      %s131 = scalar_select %p130, %s13, 1
      %s132 = smul.addr %s131, 8
      %s133 = scalar_lea.vmem %s2, %s132
      %s134 = smul.u32 64, %s13
      %p135 = scmp.lt.s32.totalorder %s134, 127
      %s136 = scalar_select %p135, %s134, 127
      %s137 = smul.addr %s136, 4
      %s138 = scalar_lea.vmem %s0, %s137
      %s139 = smul.u32 64, %s13
      %p140 = scmp.lt.s32.totalorder %s13, 1
      %s141 = scalar_select %p140, %s13, 1
      %s142 = smul.addr %s141, 8
      %s143 = scalar_lea.vmem %s2, %s142
      %v145 = vld [vmem:[%s138] sm:$0xf]
      %v146 = vld [vmem:[%s138 + $0x4] sm:$0xf]
      %v147 = vld [vmem:[%s138 + $0x8] sm:$0xf]
      %v148 = vld [vmem:[%s138 + $0xc] sm:$0xf]
      %v149 = vld [vmem:[%s138 + $0x10] sm:$0xf]
      %v150 = vld [vmem:[%s138 + $0x14] sm:$0xf]
      %v151 = vld [vmem:[%s138 + $0x18] sm:$0xf]
      %v152 = vld [vmem:[%s138 + $0x1c] sm:$0xf]
      %v153 = vld [vmem:[%s138 + $0x20] sm:$0xf]
      %v154 = vld [vmem:[%s138 + $0x24] sm:$0xf]
      %v155 = vld [vmem:[%s138 + $0x28] sm:$0xf]
      %v156 = vld [vmem:[%s138 + $0x2c] sm:$0xf]
      %v157 = vld [vmem:[%s138 + $0x30] sm:$0xf]
      %v158 = vld [vmem:[%s138 + $0x34] sm:$0xf]
      %v159 = vld [vmem:[%s138 + $0x38] sm:$0xf]
      %v160 = vld [vmem:[%s138 + $0x3c] sm:$0xf]
      %v161 = vld [vmem:[%s138 + $0x40] sm:$0xf]
      %v162 = vld [vmem:[%s138 + $0x44] sm:$0xf]
      %v163 = vld [vmem:[%s138 + $0x48] sm:$0xf]
      %v164 = vld [vmem:[%s138 + $0x4c] sm:$0xf]
      %v165 = vld [vmem:[%s138 + $0x50] sm:$0xf]
      %v166 = vld [vmem:[%s138 + $0x54] sm:$0xf]
      %v167 = vld [vmem:[%s138 + $0x58] sm:$0xf]
      %v168 = vld [vmem:[%s138 + $0x5c] sm:$0xf]
      %v169 = vld [vmem:[%s138 + $0x60] sm:$0xf]
      %v170 = vld [vmem:[%s138 + $0x64] sm:$0xf]
      %v171 = vld [vmem:[%s138 + $0x68] sm:$0xf]
      %v172 = vld [vmem:[%s138 + $0x6c] sm:$0xf]
      %v173 = vld [vmem:[%s138 + $0x70] sm:$0xf]
      %v174 = vld [vmem:[%s138 + $0x74] sm:$0xf]
      %v175 = vld [vmem:[%s138 + $0x78] sm:$0xf]
      %v176 = vld [vmem:[%s138 + $0x7c] sm:$0xf]
      %v177 = vld [vmem:[%s138 + $0x80] sm:$0xf]
      %v178 = vld [vmem:[%s138 + $0x84] sm:$0xf]
      %v179 = vld [vmem:[%s138 + $0x88] sm:$0xf]
      %v180 = vld [vmem:[%s138 + $0x8c] sm:$0xf]
      %v181 = vld [vmem:[%s138 + $0x90] sm:$0xf]
      %v182 = vld [vmem:[%s138 + $0x94] sm:$0xf]
      %v183 = vld [vmem:[%s138 + $0x98] sm:$0xf]
      %v184 = vld [vmem:[%s138 + $0x9c] sm:$0xf]
      %v185 = vld [vmem:[%s138 + $0xa0] sm:$0xf]
      %v186 = vld [vmem:[%s138 + $0xa4] sm:$0xf]
      %v187 = vld [vmem:[%s138 + $0xa8] sm:$0xf]
      %v188 = vld [vmem:[%s138 + $0xac] sm:$0xf]
      %v189 = vld [vmem:[%s138 + $0xb0] sm:$0xf]
      %v190 = vld [vmem:[%s138 + $0xb4] sm:$0xf]
      %v191 = vld [vmem:[%s138 + $0xb8] sm:$0xf]
      %v192 = vld [vmem:[%s138 + $0xbc] sm:$0xf]
      %v193 = vld [vmem:[%s138 + $0xc0] sm:$0xf]
      %v194 = vld [vmem:[%s138 + $0xc4] sm:$0xf]
      %v195 = vld [vmem:[%s138 + $0xc8] sm:$0xf]
      %v196 = vld [vmem:[%s138 + $0xcc] sm:$0xf]
      %v197 = vld [vmem:[%s138 + $0xd0] sm:$0xf]
      %v198 = vld [vmem:[%s138 + $0xd4] sm:$0xf]
      %v199 = vld [vmem:[%s138 + $0xd8] sm:$0xf]
      %v200 = vld [vmem:[%s138 + $0xdc] sm:$0xf]
      %v201 = vld [vmem:[%s138 + $0xe0] sm:$0xf]
      %v202 = vld [vmem:[%s138 + $0xe4] sm:$0xf]
      %v203 = vld [vmem:[%s138 + $0xe8] sm:$0xf]
      %v204 = vld [vmem:[%s138 + $0xec] sm:$0xf]
      %v205 = vld [vmem:[%s138 + $0xf0] sm:$0xf]
      %v206 = vld [vmem:[%s138 + $0xf4] sm:$0xf]
      %v207 = vld [vmem:[%s138 + $0xf8] sm:$0xf]
      %v208 = vld [vmem:[%s138 + $0xfc] sm:$0xf]
      %v209 = vld [vmem:[%s1] sm:$0xf]
      %v210 = vld [vmem:[%s1 + $0x4] sm:$0xf]
      %v211 = vld [vmem:[%s1 + $0x8] sm:$0xf]
      %v212 = vld [vmem:[%s1 + $0xc] sm:$0xf]
      %v213 = vld [vmem:[%s1 + $0x10] sm:$0x3]
      %v278 = vunpack.c.l.b16 %v145
      %v279 = vunpack.c.l.b16 %v146
      %v280 = vunpack.c.l.b16 %v147
      %v281 = vunpack.c.l.b16 %v148
      %v282 = vunpack.c.l.b16 %v149
      %v283 = vunpack.c.l.b16 %v150
      %v284 = vunpack.c.l.b16 %v151
      %v285 = vunpack.c.l.b16 %v152
      %v286 = vunpack.c.l.b16 %v153
      %v287 = vunpack.c.l.b16 %v154
      %v288 = vunpack.c.l.b16 %v155
      %v289 = vunpack.c.l.b16 %v156
      %v290 = vunpack.c.l.b16 %v157
      %v291 = vunpack.c.l.b16 %v158
      %v292 = vunpack.c.l.b16 %v159
      %v293 = vunpack.c.l.b16 %v160
      %v294 = vunpack.c.l.b16 %v161
      %v295 = vunpack.c.l.b16 %v162
      %v296 = vunpack.c.l.b16 %v163
      %v297 = vunpack.c.l.b16 %v164
      %v298 = vunpack.c.l.b16 %v165
      %v299 = vunpack.c.l.b16 %v166
      %v300 = vunpack.c.l.b16 %v167
      %v301 = vunpack.c.l.b16 %v168
      %v302 = vunpack.c.l.b16 %v169
      %v303 = vunpack.c.l.b16 %v170
      %v304 = vunpack.c.l.b16 %v171
      %v305 = vunpack.c.l.b16 %v172
      %v306 = vunpack.c.l.b16 %v173
      %v307 = vunpack.c.l.b16 %v174
      %v308 = vunpack.c.l.b16 %v175
      %v309 = vunpack.c.l.b16 %v176
      %v310 = vunpack.c.l.b16 %v177
      %v311 = vunpack.c.l.b16 %v178
      %v312 = vunpack.c.l.b16 %v179
      %v313 = vunpack.c.l.b16 %v180
      %v314 = vunpack.c.l.b16 %v181
      %v315 = vunpack.c.l.b16 %v182
      %v316 = vunpack.c.l.b16 %v183
      %v317 = vunpack.c.l.b16 %v184
      %v318 = vunpack.c.l.b16 %v185
      %v319 = vunpack.c.l.b16 %v186
      %v320 = vunpack.c.l.b16 %v187
      %v321 = vunpack.c.l.b16 %v188
      %v322 = vunpack.c.l.b16 %v189
      %v323 = vunpack.c.l.b16 %v190
      %v324 = vunpack.c.l.b16 %v191
      %v325 = vunpack.c.l.b16 %v192
      %v326 = vunpack.c.l.b16 %v193
      %v327 = vunpack.c.l.b16 %v194
      %v328 = vunpack.c.l.b16 %v195
      %v329 = vunpack.c.l.b16 %v196
      %v330 = vunpack.c.l.b16 %v197
      %v331 = vunpack.c.l.b16 %v198
      %v332 = vunpack.c.l.b16 %v199
      %v333 = vunpack.c.l.b16 %v200
      %v334 = vunpack.c.l.b16 %v201
      %v335 = vunpack.c.l.b16 %v202
      %v336 = vunpack.c.l.b16 %v203
      %v337 = vunpack.c.l.b16 %v204
      %v338 = vunpack.c.l.b16 %v205
      %v339 = vunpack.c.l.b16 %v206
      %v340 = vunpack.c.l.b16 %v207
      %v341 = vunpack.c.l.b16 %v208
      %v342 = vpack.c.b16 %v279, %v278
      %v343 = vpack.c.b16 %v281, %v280
      %v344 = vpack.c.b16 %v283, %v282
      %v345 = vpack.c.b16 %v285, %v284
      %v346 = vpack.c.b16 %v287, %v286
      %v347 = vpack.c.b16 %v289, %v288
      %v348 = vpack.c.b16 %v291, %v290
      %v349 = vpack.c.b16 %v293, %v292
      %v350 = vpack.c.b16 %v295, %v294
      %v351 = vpack.c.b16 %v297, %v296
      %v352 = vpack.c.b16 %v299, %v298
      %v353 = vpack.c.b16 %v301, %v300
      %v354 = vpack.c.b16 %v303, %v302
      %v355 = vpack.c.b16 %v305, %v304
      %v356 = vpack.c.b16 %v307, %v306
      %v357 = vpack.c.b16 %v309, %v308
      %v358 = vpack.c.b16 %v311, %v310
      %v359 = vpack.c.b16 %v313, %v312
      %v360 = vpack.c.b16 %v315, %v314
      %v361 = vpack.c.b16 %v317, %v316
      %v362 = vpack.c.b16 %v319, %v318
      %v363 = vpack.c.b16 %v321, %v320
      %v364 = vpack.c.b16 %v323, %v322
      %v365 = vpack.c.b16 %v325, %v324
      %v366 = vpack.c.b16 %v327, %v326
      %v367 = vpack.c.b16 %v329, %v328
      %v368 = vpack.c.b16 %v331, %v330
      %v369 = vpack.c.b16 %v333, %v332
      %v370 = vpack.c.b16 %v335, %v334
      %v371 = vpack.c.b16 %v337, %v336
      %v372 = vpack.c.b16 %v339, %v338
      %v373 = vpack.c.b16 %v341, %v340
      %v379 = vunpack.c.l.b16 %v209
      %v380 = vunpack.c.l.b16 %v210
      %v381 = vunpack.c.l.b16 %v211
      %v382 = vunpack.c.l.b16 %v212
      %v383 = vunpack.c.l.b16 %v213
      %v384 = vpack.c.b16 %v380, %v379
      %v385 = vpack.c.b16 %v382, %v381
      %v386 = vpack.c.b16 %v383, %v383
      %vm389 = vcmask 293888
      %v391 = vsel %vm389, %v342, 0
      %v394 = vsel %vm389, %v343, 0
      %v397 = vsel %vm389, %v344, 0
      %v400 = vsel %vm389, %v345, 0
      %v403 = vsel %vm389, %v346, 0
      %v406 = vsel %vm389, %v347, 0
      %v409 = vsel %vm389, %v348, 0
      %v412 = vsel %vm389, %v349, 0
      %v415 = vsel %vm389, %v350, 0
      %v418 = vsel %vm389, %v351, 0
      %v421 = vsel %vm389, %v352, 0
      %v424 = vsel %vm389, %v353, 0
      %v427 = vsel %vm389, %v354, 0
      %v430 = vsel %vm389, %v355, 0
      %v433 = vsel %vm389, %v356, 0
      %v436 = vsel %vm389, %v357, 0
      %v439 = vsel %vm389, %v358, 0
      %v442 = vsel %vm389, %v359, 0
      %v445 = vsel %vm389, %v360, 0
      %v448 = vsel %vm389, %v361, 0
      %v451 = vsel %vm389, %v362, 0
      %v454 = vsel %vm389, %v363, 0
      %v457 = vsel %vm389, %v364, 0
      %v460 = vsel %vm389, %v365, 0
      %v463 = vsel %vm389, %v366, 0
      %v466 = vsel %vm389, %v367, 0
      %v469 = vsel %vm389, %v368, 0
      %v472 = vsel %vm389, %v369, 0
      %v475 = vsel %vm389, %v370, 0
      %v478 = vsel %vm389, %v371, 0
      %v481 = vsel %vm389, %v372, 0
      %v484 = vsel %vm389, %v373, 0
      %vm486 = vcmask 1041408
      %v488 = vsel %vm486, %v386, 0
      %490 = vmatprep.subr.bf16.mxu0 0
      %491 = vmatpush1.bf16.msra.mxu0 0
      %492 = vmatprep.subr.bf16.mxu0 0
      %493 = vmatpush1.bf16.msra.mxu0 0
      %494 = vmatprep.subr.bf16.mxu0 0
      %495 = vmatpush1.bf16.msra.mxu0 0
      %496 = vmatprep.subr.bf16.mxu0 0
      %497 = vmatpush1.bf16.msra.mxu0 0
      %498 = vmatprep.subr.bf16.mxu0 0
      %499 = vmatpush1.bf16.msra.mxu0 0
      %500 = vmatprep.subr.bf16.mxu0 0
      %501 = vmatpush1.bf16.msra.mxu0 %v488
      %502 = vmatprep.subr.bf16.mxu0 0
      %503 = vmatpush1.bf16.msra.mxu0 %v385
      %504 = vmatprep.subr.bf16.mxu0 0
      %505 = vmatpush1.bf16.msra.mxu0 %v384
      %506 = vmatprep.subr.bf16.mxu0 0
      %507 = vmatpush2.bf16.msra.mxu0 0
      %508 = vmatprep.subr.bf16.mxu0 0
      %509 = vmatpush2.bf16.msra.mxu0 0
      %510 = vmatprep.subr.bf16.mxu0 0
      %511 = vmatpush2.bf16.msra.mxu0 0
      %512 = vmatprep.subr.bf16.mxu0 0
      %513 = vmatpush2.bf16.msra.mxu0 0
      %514 = vmatprep.subr.bf16.mxu0 0
      %515 = vmatpush2.bf16.msra.mxu0 0
      %516 = vmatprep.subr.bf16.mxu0 0
      %517 = vmatpush2.bf16.msra.mxu0 0
      %518 = vmatprep.subr.bf16.mxu0 0
      %519 = vmatpush2.bf16.msra.mxu0 0
      %520 = vmatprep.subr.bf16.mxu0 0
      %521 = vmatpush2.bf16.msra.mxu0 0
      %522 = vmatprep.mubr.bf16.mxu0 0
      %523 = vmatmul.mubr.bf16.gmra.mxu0 %v391
      %v524 = vpop.f32.mrf.mxu0
      %v525 = vadd.f32 0.0, %v524
      %v526 = vpop.f32.mrf.mxu0
      %v527 = vpop.f32.mrf.mxu0
      %v528 = vadd.f32 0.0, %v527
      %v529 = vpop.f32.mrf.mxu0
      %530 = vmatprep.mubr.bf16.mxu0 0
      %531 = vmatmul.mubr.bf16.gmra.mxu0 %v394
      %v532 = vpop.f32.mrf.mxu0
      %v533 = vadd.f32 0.0, %v532
      %v534 = vpop.f32.mrf.mxu0
      %v535 = vpop.f32.mrf.mxu0
      %v536 = vadd.f32 0.0, %v535
      %v537 = vpop.f32.mrf.mxu0
      %538 = vmatprep.mubr.bf16.mxu0 0
      %539 = vmatmul.mubr.bf16.gmra.mxu0 %v397
      %v540 = vpop.f32.mrf.mxu0
      %v541 = vadd.f32 0.0, %v540
      %v542 = vpop.f32.mrf.mxu0
      %v543 = vpop.f32.mrf.mxu0
      %v544 = vadd.f32 0.0, %v543
      %v545 = vpop.f32.mrf.mxu0
      %546 = vmatprep.mubr.bf16.mxu0 0
      %547 = vmatmul.mubr.bf16.gmra.mxu0 %v400
      %v548 = vpop.f32.mrf.mxu0
      %v549 = vadd.f32 0.0, %v548
      %v550 = vpop.f32.mrf.mxu0
      %v551 = vpop.f32.mrf.mxu0
      %v552 = vadd.f32 0.0, %v551
      %v553 = vpop.f32.mrf.mxu0
      %554 = vmatprep.mubr.bf16.mxu0 0
      %555 = vmatmul.mubr.bf16.gmra.mxu0 %v403
      %v556 = vpop.f32.mrf.mxu0
      %v557 = vadd.f32 0.0, %v556
      %v558 = vpop.f32.mrf.mxu0
      %v559 = vpop.f32.mrf.mxu0
      %v560 = vadd.f32 0.0, %v559
      %v561 = vpop.f32.mrf.mxu0
      %562 = vmatprep.mubr.bf16.mxu0 0
      %563 = vmatmul.mubr.bf16.gmra.mxu0 %v406
      %v564 = vpop.f32.mrf.mxu0
      %v565 = vadd.f32 0.0, %v564
      %v566 = vpop.f32.mrf.mxu0
      %v567 = vpop.f32.mrf.mxu0
      %v568 = vadd.f32 0.0, %v567
      %v569 = vpop.f32.mrf.mxu0
      %570 = vmatprep.mubr.bf16.mxu0 0
      %571 = vmatmul.mubr.bf16.gmra.mxu0 %v409
      %v572 = vpop.f32.mrf.mxu0
      %v573 = vadd.f32 0.0, %v572
      %v574 = vpop.f32.mrf.mxu0
      %v575 = vpop.f32.mrf.mxu0
      %v576 = vadd.f32 0.0, %v575
      %v577 = vpop.f32.mrf.mxu0
      %578 = vmatprep.mubr.bf16.mxu0 0
      %579 = vmatmul.mubr.bf16.gmra.mxu0 %v412
      %v580 = vpop.f32.mrf.mxu0
      %v581 = vadd.f32 0.0, %v580
      %v582 = vpop.f32.mrf.mxu0
      %v583 = vpop.f32.mrf.mxu0
      %v584 = vadd.f32 0.0, %v583
      %v585 = vpop.f32.mrf.mxu0
      %586 = vmatprep.mubr.bf16.mxu0 0
      %587 = vmatmul.mubr.bf16.gmra.mxu0 %v415
      %v588 = vpop.f32.mrf.mxu0
      %v589 = vadd.f32 0.0, %v588
      %v590 = vpop.f32.mrf.mxu0
      %v591 = vpop.f32.mrf.mxu0
      %v592 = vadd.f32 0.0, %v591
      %v593 = vpop.f32.mrf.mxu0
      %594 = vmatprep.mubr.bf16.mxu0 0
      %595 = vmatmul.mubr.bf16.gmra.mxu0 %v418
      %v596 = vpop.f32.mrf.mxu0
      %v597 = vadd.f32 0.0, %v596
      %v598 = vpop.f32.mrf.mxu0
      %v599 = vpop.f32.mrf.mxu0
      %v600 = vadd.f32 0.0, %v599
      %v601 = vpop.f32.mrf.mxu0
      %602 = vmatprep.mubr.bf16.mxu0 0
      %603 = vmatmul.mubr.bf16.gmra.mxu0 %v421
      %v604 = vpop.f32.mrf.mxu0
      %v605 = vadd.f32 0.0, %v604
      %v606 = vpop.f32.mrf.mxu0
      %v607 = vpop.f32.mrf.mxu0
      %v608 = vadd.f32 0.0, %v607
      %v609 = vpop.f32.mrf.mxu0
      %610 = vmatprep.mubr.bf16.mxu0 0
      %611 = vmatmul.mubr.bf16.gmra.mxu0 %v424
      %v612 = vpop.f32.mrf.mxu0
      %v613 = vadd.f32 0.0, %v612
      %v614 = vpop.f32.mrf.mxu0
      %v615 = vpop.f32.mrf.mxu0
      %v616 = vadd.f32 0.0, %v615
      %v617 = vpop.f32.mrf.mxu0
      %618 = vmatprep.mubr.bf16.mxu0 0
      %619 = vmatmul.mubr.bf16.gmra.mxu0 %v427
      %v620 = vpop.f32.mrf.mxu0
      %v621 = vadd.f32 0.0, %v620
      %v622 = vpop.f32.mrf.mxu0
      %v623 = vpop.f32.mrf.mxu0
      %v624 = vadd.f32 0.0, %v623
      %v625 = vpop.f32.mrf.mxu0
      %626 = vmatprep.mubr.bf16.mxu0 0
      %627 = vmatmul.mubr.bf16.gmra.mxu0 %v430
      %v628 = vpop.f32.mrf.mxu0
      %v629 = vadd.f32 0.0, %v628
      %v630 = vpop.f32.mrf.mxu0
      %v631 = vpop.f32.mrf.mxu0
      %v632 = vadd.f32 0.0, %v631
      %v633 = vpop.f32.mrf.mxu0
      %634 = vmatprep.mubr.bf16.mxu0 0
      %635 = vmatmul.mubr.bf16.gmra.mxu0 %v433
      %v636 = vpop.f32.mrf.mxu0
      %v637 = vadd.f32 0.0, %v636
      %v638 = vpop.f32.mrf.mxu0
      %v639 = vpop.f32.mrf.mxu0
      %v640 = vadd.f32 0.0, %v639
      %v641 = vpop.f32.mrf.mxu0
      %642 = vmatprep.mubr.bf16.mxu0 0
      %643 = vmatmul.mubr.bf16.gmra.mxu0 %v436
      %v644 = vpop.f32.mrf.mxu0
      %v645 = vadd.f32 0.0, %v644
      %v646 = vpop.f32.mrf.mxu0
      %v647 = vpop.f32.mrf.mxu0
      %v648 = vadd.f32 0.0, %v647
      %v649 = vpop.f32.mrf.mxu0
      %650 = vmatprep.mubr.bf16.mxu0 0
      %651 = vmatmul.mubr.bf16.gmra.mxu0 %v439
      %v652 = vpop.f32.mrf.mxu0
      %v653 = vadd.f32 0.0, %v652
      %v654 = vpop.f32.mrf.mxu0
      %v655 = vpop.f32.mrf.mxu0
      %v656 = vadd.f32 0.0, %v655
      %v657 = vpop.f32.mrf.mxu0
      %658 = vmatprep.mubr.bf16.mxu0 0
      %659 = vmatmul.mubr.bf16.gmra.mxu0 %v442
      %v660 = vpop.f32.mrf.mxu0
      %v661 = vadd.f32 0.0, %v660
      %v662 = vpop.f32.mrf.mxu0
      %v663 = vpop.f32.mrf.mxu0
      %v664 = vadd.f32 0.0, %v663
      %v665 = vpop.f32.mrf.mxu0
      %666 = vmatprep.mubr.bf16.mxu0 0
      %667 = vmatmul.mubr.bf16.gmra.mxu0 %v445
      %v668 = vpop.f32.mrf.mxu0
      %v669 = vadd.f32 0.0, %v668
      %v670 = vpop.f32.mrf.mxu0
      %v671 = vpop.f32.mrf.mxu0
      %v672 = vadd.f32 0.0, %v671
      %v673 = vpop.f32.mrf.mxu0
      %674 = vmatprep.mubr.bf16.mxu0 0
      %675 = vmatmul.mubr.bf16.gmra.mxu0 %v448
      %v676 = vpop.f32.mrf.mxu0
      %v677 = vadd.f32 0.0, %v676
      %v678 = vpop.f32.mrf.mxu0
      %v679 = vpop.f32.mrf.mxu0
      %v680 = vadd.f32 0.0, %v679
      %v681 = vpop.f32.mrf.mxu0
      %682 = vmatprep.mubr.bf16.mxu0 0
      %683 = vmatmul.mubr.bf16.gmra.mxu0 %v451
      %v684 = vpop.f32.mrf.mxu0
      %v685 = vadd.f32 0.0, %v684
      %v686 = vpop.f32.mrf.mxu0
      %v687 = vpop.f32.mrf.mxu0
      %v688 = vadd.f32 0.0, %v687
      %v689 = vpop.f32.mrf.mxu0
      %690 = vmatprep.mubr.bf16.mxu0 0
      %691 = vmatmul.mubr.bf16.gmra.mxu0 %v454
      %v692 = vpop.f32.mrf.mxu0
      %v693 = vadd.f32 0.0, %v692
      %v694 = vpop.f32.mrf.mxu0
      %v695 = vpop.f32.mrf.mxu0
      %v696 = vadd.f32 0.0, %v695
      %v697 = vpop.f32.mrf.mxu0
      %698 = vmatprep.mubr.bf16.mxu0 0
      %699 = vmatmul.mubr.bf16.gmra.mxu0 %v457
      %v700 = vpop.f32.mrf.mxu0
      %v701 = vadd.f32 0.0, %v700
      %v702 = vpop.f32.mrf.mxu0
      %v703 = vpop.f32.mrf.mxu0
      %v704 = vadd.f32 0.0, %v703
      %v705 = vpop.f32.mrf.mxu0
      %706 = vmatprep.mubr.bf16.mxu0 0
      %707 = vmatmul.mubr.bf16.gmra.mxu0 %v460
      %v708 = vpop.f32.mrf.mxu0
      %v709 = vadd.f32 0.0, %v708
      %v710 = vpop.f32.mrf.mxu0
      %v711 = vpop.f32.mrf.mxu0
      %v712 = vadd.f32 0.0, %v711
      %v713 = vpop.f32.mrf.mxu0
      %714 = vmatprep.mubr.bf16.mxu0 0
      %715 = vmatmul.mubr.bf16.gmra.mxu0 %v463
      %v716 = vpop.f32.mrf.mxu0
      %v717 = vadd.f32 0.0, %v716
      %v718 = vpop.f32.mrf.mxu0
      %v719 = vpop.f32.mrf.mxu0
      %v720 = vadd.f32 0.0, %v719
      %v721 = vpop.f32.mrf.mxu0
      %722 = vmatprep.mubr.bf16.mxu0 0
      %723 = vmatmul.mubr.bf16.gmra.mxu0 %v466
      %v724 = vpop.f32.mrf.mxu0
      %v725 = vadd.f32 0.0, %v724
      %v726 = vpop.f32.mrf.mxu0
      %v727 = vpop.f32.mrf.mxu0
      %v728 = vadd.f32 0.0, %v727
      %v729 = vpop.f32.mrf.mxu0
      %730 = vmatprep.mubr.bf16.mxu0 0
      %731 = vmatmul.mubr.bf16.gmra.mxu0 %v469
      %v732 = vpop.f32.mrf.mxu0
      %v733 = vadd.f32 0.0, %v732
      %v734 = vpop.f32.mrf.mxu0
      %v735 = vpop.f32.mrf.mxu0
      %v736 = vadd.f32 0.0, %v735
      %v737 = vpop.f32.mrf.mxu0
      %738 = vmatprep.mubr.bf16.mxu0 0
      %739 = vmatmul.mubr.bf16.gmra.mxu0 %v472
      %v740 = vpop.f32.mrf.mxu0
      %v741 = vadd.f32 0.0, %v740
      %v742 = vpop.f32.mrf.mxu0
      %v743 = vpop.f32.mrf.mxu0
      %v744 = vadd.f32 0.0, %v743
      %v745 = vpop.f32.mrf.mxu0
      %746 = vmatprep.mubr.bf16.mxu0 0
      %747 = vmatmul.mubr.bf16.gmra.mxu0 %v475
      %v748 = vpop.f32.mrf.mxu0
      %v749 = vadd.f32 0.0, %v748
      %v750 = vpop.f32.mrf.mxu0
      %v751 = vpop.f32.mrf.mxu0
      %v752 = vadd.f32 0.0, %v751
      %v753 = vpop.f32.mrf.mxu0
      %754 = vmatprep.mubr.bf16.mxu0 0
      %755 = vmatmul.mubr.bf16.gmra.mxu0 %v478
      %v756 = vpop.f32.mrf.mxu0
      %v757 = vadd.f32 0.0, %v756
      %v758 = vpop.f32.mrf.mxu0
      %v759 = vpop.f32.mrf.mxu0
      %v760 = vadd.f32 0.0, %v759
      %v761 = vpop.f32.mrf.mxu0
      %762 = vmatprep.mubr.bf16.mxu0 0
      %763 = vmatmul.mubr.bf16.gmra.mxu0 %v481
      %v764 = vpop.f32.mrf.mxu0
      %v765 = vadd.f32 0.0, %v764
      %v766 = vpop.f32.mrf.mxu0
      %v767 = vpop.f32.mrf.mxu0
      %v768 = vadd.f32 0.0, %v767
      %v769 = vpop.f32.mrf.mxu0
      %770 = vmatprep.mubr.bf16.mxu0 0
      %771 = vmatmul.mubr.bf16.gmra.mxu0 %v484
      %v772 = vpop.f32.mrf.mxu0
      %v773 = vadd.f32 0.0, %v772
      %v774 = vpop.f32.mrf.mxu0
      %v775 = vpop.f32.mrf.mxu0
      %v776 = vadd.f32 0.0, %v775
      %v777 = vpop.f32.mrf.mxu0
      %778 = vdwg.mxu0
      %vm779 = vcmask 64512
      %v780 = vsel %vm779, %v525, 0.0
      %v781 = vsel %vm779, %v528, 0.0
      %v782 = vadd.f32 %v780, %v781
      %v783 = vsel %vm779, %v533, 0.0
      %v784 = vadd.f32 %v782, %v783
      %v785 = vsel %vm779, %v536, 0.0
      %v786 = vadd.f32 %v784, %v785
      %v787 = vsel %vm779, %v541, 0.0
      %v788 = vadd.f32 %v786, %v787
      %v789 = vsel %vm779, %v544, 0.0
      %v790 = vadd.f32 %v788, %v789
      %v791 = vsel %vm779, %v549, 0.0
      %v792 = vadd.f32 %v790, %v791
      %v793 = vsel %vm779, %v552, 0.0
      %v794 = vadd.f32 %v792, %v793
      %v795 = vsel %vm779, %v557, 0.0
      %v796 = vadd.f32 %v794, %v795
      %v797 = vsel %vm779, %v560, 0.0
      %v798 = vadd.f32 %v796, %v797
      %v799 = vsel %vm779, %v565, 0.0
      %v800 = vadd.f32 %v798, %v799
      %v801 = vsel %vm779, %v568, 0.0
      %v802 = vadd.f32 %v800, %v801
      %v803 = vsel %vm779, %v573, 0.0
      %v804 = vadd.f32 %v802, %v803
      %v805 = vsel %vm779, %v576, 0.0
      %v806 = vadd.f32 %v804, %v805
      %v807 = vsel %vm779, %v581, 0.0
      %v808 = vadd.f32 %v806, %v807
      %v809 = vsel %vm779, %v584, 0.0
      %v810 = vadd.f32 %v808, %v809
      %v811 = vsel %vm779, %v589, 0.0
      %v812 = vadd.f32 %v810, %v811
      %v813 = vsel %vm779, %v592, 0.0
      %v814 = vadd.f32 %v812, %v813
      %v815 = vsel %vm779, %v597, 0.0
      %v816 = vadd.f32 %v814, %v815
      %v817 = vsel %vm779, %v600, 0.0
      %v818 = vadd.f32 %v816, %v817
      %v819 = vsel %vm779, %v605, 0.0
      %v820 = vadd.f32 %v818, %v819
      %v821 = vsel %vm779, %v608, 0.0
      %v822 = vadd.f32 %v820, %v821
      %v823 = vsel %vm779, %v613, 0.0
      %v824 = vadd.f32 %v822, %v823
      %v825 = vsel %vm779, %v616, 0.0
      %v826 = vadd.f32 %v824, %v825
      %v827 = vsel %vm779, %v621, 0.0
      %v828 = vadd.f32 %v826, %v827
      %v829 = vsel %vm779, %v624, 0.0
      %v830 = vadd.f32 %v828, %v829
      %v831 = vsel %vm779, %v629, 0.0
      %v832 = vadd.f32 %v830, %v831
      %v833 = vsel %vm779, %v632, 0.0
      %v834 = vadd.f32 %v832, %v833
      %v835 = vsel %vm779, %v637, 0.0
      %v836 = vadd.f32 %v834, %v835
      %v837 = vsel %vm779, %v640, 0.0
      %v838 = vadd.f32 %v836, %v837
      %v839 = vsel %vm779, %v645, 0.0
      %v840 = vadd.f32 %v838, %v839
      %v841 = vsel %vm779, %v648, 0.0
      %v842 = vadd.f32 %v840, %v841
      %v843 = vsel %vm779, %v653, 0.0
      %v844 = vadd.f32 %v842, %v843
      %v845 = vsel %vm779, %v656, 0.0
      %v846 = vadd.f32 %v844, %v845
      %v847 = vsel %vm779, %v661, 0.0
      %v848 = vadd.f32 %v846, %v847
      %v849 = vsel %vm779, %v664, 0.0
      %v850 = vadd.f32 %v848, %v849
      %v851 = vsel %vm779, %v669, 0.0
      %v852 = vadd.f32 %v850, %v851
      %v853 = vsel %vm779, %v672, 0.0
      %v854 = vadd.f32 %v852, %v853
      %v855 = vsel %vm779, %v677, 0.0
      %v856 = vadd.f32 %v854, %v855
      %v857 = vsel %vm779, %v680, 0.0
      %v858 = vadd.f32 %v856, %v857
      %v859 = vsel %vm779, %v685, 0.0
      %v860 = vadd.f32 %v858, %v859
      %v861 = vsel %vm779, %v688, 0.0
      %v862 = vadd.f32 %v860, %v861
      %v863 = vsel %vm779, %v693, 0.0
      %v864 = vadd.f32 %v862, %v863
      %v865 = vsel %vm779, %v696, 0.0
      %v866 = vadd.f32 %v864, %v865
      %v867 = vsel %vm779, %v701, 0.0
      %v868 = vadd.f32 %v866, %v867
      %v869 = vsel %vm779, %v704, 0.0
      %v870 = vadd.f32 %v868, %v869
      %v871 = vsel %vm779, %v709, 0.0
      %v872 = vadd.f32 %v870, %v871
      %v873 = vsel %vm779, %v712, 0.0
      %v874 = vadd.f32 %v872, %v873
      %v875 = vsel %vm779, %v717, 0.0
      %v876 = vadd.f32 %v874, %v875
      %v877 = vsel %vm779, %v720, 0.0
      %v878 = vadd.f32 %v876, %v877
      %v879 = vsel %vm779, %v725, 0.0
      %v880 = vadd.f32 %v878, %v879
      %v881 = vsel %vm779, %v728, 0.0
      %v882 = vadd.f32 %v880, %v881
      %v883 = vsel %vm779, %v733, 0.0
      %v884 = vadd.f32 %v882, %v883
      %v885 = vsel %vm779, %v736, 0.0
      %v886 = vadd.f32 %v884, %v885
      %v887 = vsel %vm779, %v741, 0.0
      %v888 = vadd.f32 %v886, %v887
      %v889 = vsel %vm779, %v744, 0.0
      %v890 = vadd.f32 %v888, %v889
      %v891 = vsel %vm779, %v749, 0.0
      %v892 = vadd.f32 %v890, %v891
      %v893 = vsel %vm779, %v752, 0.0
      %v894 = vadd.f32 %v892, %v893
      %v895 = vsel %vm779, %v757, 0.0
      %v896 = vadd.f32 %v894, %v895
      %v897 = vsel %vm779, %v760, 0.0
      %v898 = vadd.f32 %v896, %v897
      %v899 = vsel %vm779, %v765, 0.0
      %v900 = vadd.f32 %v898, %v899
      %v901 = vsel %vm779, %v768, 0.0
      %v902 = vadd.f32 %v900, %v901
      %v903 = vsel %vm779, %v773, 0.0
      %v904 = vadd.f32 %v902, %v903
      %v905 = vsel %vm779, %v776, 0.0
      %v906 = vadd.f32 %v904, %v905
      %v907 = vrot.slane %v906, 4
      %v908 = vadd.f32 %v906, %v907
      %v909 = vrot.slane %v908, 2
      %v910 = vadd.f32 %v908, %v909
      %v911 = vrot.slane %v910, 1
      %v912 = vadd.f32 %v910, %v911
      %v913 = vmul.f32 %v525, %v525
      %v914 = vmul.f32 %v528, %v528
      %v915 = vmul.f32 %v533, %v533
      %v916 = vmul.f32 %v536, %v536
      %v917 = vmul.f32 %v541, %v541
      %v918 = vmul.f32 %v544, %v544
      %v919 = vmul.f32 %v549, %v549
      %v920 = vmul.f32 %v552, %v552
      %v921 = vmul.f32 %v557, %v557
      %v922 = vmul.f32 %v560, %v560
      %v923 = vmul.f32 %v565, %v565
      %v924 = vmul.f32 %v568, %v568
      %v925 = vmul.f32 %v573, %v573
      %v926 = vmul.f32 %v576, %v576
      %v927 = vmul.f32 %v581, %v581
      %v928 = vmul.f32 %v584, %v584
      %v929 = vmul.f32 %v589, %v589
      %v930 = vmul.f32 %v592, %v592
      %v931 = vmul.f32 %v597, %v597
      %v932 = vmul.f32 %v600, %v600
      %v933 = vmul.f32 %v605, %v605
      %v934 = vmul.f32 %v608, %v608
      %v935 = vmul.f32 %v613, %v613
      %v936 = vmul.f32 %v616, %v616
      %v937 = vmul.f32 %v621, %v621
      %v938 = vmul.f32 %v624, %v624
      %v939 = vmul.f32 %v629, %v629
      %v940 = vmul.f32 %v632, %v632
      %v941 = vmul.f32 %v637, %v637
      %v942 = vmul.f32 %v640, %v640
      %v943 = vmul.f32 %v645, %v645
      %v944 = vmul.f32 %v648, %v648
      %v945 = vmul.f32 %v653, %v653
      %v946 = vmul.f32 %v656, %v656
      %v947 = vmul.f32 %v661, %v661
      %v948 = vmul.f32 %v664, %v664
      %v949 = vmul.f32 %v669, %v669
      %v950 = vmul.f32 %v672, %v672
      %v951 = vmul.f32 %v677, %v677
      %v952 = vmul.f32 %v680, %v680
      %v953 = vmul.f32 %v685, %v685
      %v954 = vmul.f32 %v688, %v688
      %v955 = vmul.f32 %v693, %v693
      %v956 = vmul.f32 %v696, %v696
      %v957 = vmul.f32 %v701, %v701
      %v958 = vmul.f32 %v704, %v704
      %v959 = vmul.f32 %v709, %v709
      %v960 = vmul.f32 %v712, %v712
      %v961 = vmul.f32 %v717, %v717
      %v962 = vmul.f32 %v720, %v720
      %v963 = vmul.f32 %v725, %v725
      %v964 = vmul.f32 %v728, %v728
      %v965 = vmul.f32 %v733, %v733
      %v966 = vmul.f32 %v736, %v736
      %v967 = vmul.f32 %v741, %v741
      %v968 = vmul.f32 %v744, %v744
      %v969 = vmul.f32 %v749, %v749
      %v970 = vmul.f32 %v752, %v752
      %v971 = vmul.f32 %v757, %v757
      %v972 = vmul.f32 %v760, %v760
      %v973 = vmul.f32 %v765, %v765
      %v974 = vmul.f32 %v768, %v768
      %v975 = vmul.f32 %v773, %v773
      %v976 = vmul.f32 %v776, %v776
      %v977 = vsel %vm779, %v913, 0.0
      %v978 = vsel %vm779, %v914, 0.0
      %v979 = vadd.f32 %v977, %v978
      %v980 = vsel %vm779, %v915, 0.0
      %v981 = vadd.f32 %v979, %v980
      %v982 = vsel %vm779, %v916, 0.0
      %v983 = vadd.f32 %v981, %v982
      %v984 = vsel %vm779, %v917, 0.0
      %v985 = vadd.f32 %v983, %v984
      %v986 = vsel %vm779, %v918, 0.0
      %v987 = vadd.f32 %v985, %v986
      %v988 = vsel %vm779, %v919, 0.0
      %v989 = vadd.f32 %v987, %v988
      %v990 = vsel %vm779, %v920, 0.0
      %v991 = vadd.f32 %v989, %v990
      %v992 = vsel %vm779, %v921, 0.0
      %v993 = vadd.f32 %v991, %v992
      %v994 = vsel %vm779, %v922, 0.0
      %v995 = vadd.f32 %v993, %v994
      %v996 = vsel %vm779, %v923, 0.0
      %v997 = vadd.f32 %v995, %v996
      %v998 = vsel %vm779, %v924, 0.0
      %v999 = vadd.f32 %v997, %v998
      %v1000 = vsel %vm779, %v925, 0.0
      %v1001 = vadd.f32 %v999, %v1000
      %v1002 = vsel %vm779, %v926, 0.0
      %v1003 = vadd.f32 %v1001, %v1002
      %v1004 = vsel %vm779, %v927, 0.0
      %v1005 = vadd.f32 %v1003, %v1004
      %v1006 = vsel %vm779, %v928, 0.0
      %v1007 = vadd.f32 %v1005, %v1006
      %v1008 = vsel %vm779, %v929, 0.0
      %v1009 = vadd.f32 %v1007, %v1008
      %v1010 = vsel %vm779, %v930, 0.0
      %v1011 = vadd.f32 %v1009, %v1010
      %v1012 = vsel %vm779, %v931, 0.0
      %v1013 = vadd.f32 %v1011, %v1012
      %v1014 = vsel %vm779, %v932, 0.0
      %v1015 = vadd.f32 %v1013, %v1014
      %v1016 = vsel %vm779, %v933, 0.0
      %v1017 = vadd.f32 %v1015, %v1016
      %v1018 = vsel %vm779, %v934, 0.0
      %v1019 = vadd.f32 %v1017, %v1018
      %v1020 = vsel %vm779, %v935, 0.0
      %v1021 = vadd.f32 %v1019, %v1020
      %v1022 = vsel %vm779, %v936, 0.0
      %v1023 = vadd.f32 %v1021, %v1022
      %v1024 = vsel %vm779, %v937, 0.0
      %v1025 = vadd.f32 %v1023, %v1024
      %v1026 = vsel %vm779, %v938, 0.0
      %v1027 = vadd.f32 %v1025, %v1026
      %v1028 = vsel %vm779, %v939, 0.0
      %v1029 = vadd.f32 %v1027, %v1028
      %v1030 = vsel %vm779, %v940, 0.0
      %v1031 = vadd.f32 %v1029, %v1030
      %v1032 = vsel %vm779, %v941, 0.0
      %v1033 = vadd.f32 %v1031, %v1032
      %v1034 = vsel %vm779, %v942, 0.0
      %v1035 = vadd.f32 %v1033, %v1034
      %v1036 = vsel %vm779, %v943, 0.0
      %v1037 = vadd.f32 %v1035, %v1036
      %v1038 = vsel %vm779, %v944, 0.0
      %v1039 = vadd.f32 %v1037, %v1038
      %v1040 = vsel %vm779, %v945, 0.0
      %v1041 = vadd.f32 %v1039, %v1040
      %v1042 = vsel %vm779, %v946, 0.0
      %v1043 = vadd.f32 %v1041, %v1042
      %v1044 = vsel %vm779, %v947, 0.0
      %v1045 = vadd.f32 %v1043, %v1044
      %v1046 = vsel %vm779, %v948, 0.0
      %v1047 = vadd.f32 %v1045, %v1046
      %v1048 = vsel %vm779, %v949, 0.0
      %v1049 = vadd.f32 %v1047, %v1048
      %v1050 = vsel %vm779, %v950, 0.0
      %v1051 = vadd.f32 %v1049, %v1050
      %v1052 = vsel %vm779, %v951, 0.0
      %v1053 = vadd.f32 %v1051, %v1052
      %v1054 = vsel %vm779, %v952, 0.0
      %v1055 = vadd.f32 %v1053, %v1054
      %v1056 = vsel %vm779, %v953, 0.0
      %v1057 = vadd.f32 %v1055, %v1056
      %v1058 = vsel %vm779, %v954, 0.0
      %v1059 = vadd.f32 %v1057, %v1058
      %v1060 = vsel %vm779, %v955, 0.0
      %v1061 = vadd.f32 %v1059, %v1060
      %v1062 = vsel %vm779, %v956, 0.0
      %v1063 = vadd.f32 %v1061, %v1062
      %v1064 = vsel %vm779, %v957, 0.0
      %v1065 = vadd.f32 %v1063, %v1064
      %v1066 = vsel %vm779, %v958, 0.0
      %v1067 = vadd.f32 %v1065, %v1066
      %v1068 = vsel %vm779, %v959, 0.0
      %v1069 = vadd.f32 %v1067, %v1068
      %v1070 = vsel %vm779, %v960, 0.0
      %v1071 = vadd.f32 %v1069, %v1070
      %v1072 = vsel %vm779, %v961, 0.0
      %v1073 = vadd.f32 %v1071, %v1072
      %v1074 = vsel %vm779, %v962, 0.0
      %v1075 = vadd.f32 %v1073, %v1074
      %v1076 = vsel %vm779, %v963, 0.0
      %v1077 = vadd.f32 %v1075, %v1076
      %v1078 = vsel %vm779, %v964, 0.0
      %v1079 = vadd.f32 %v1077, %v1078
      %v1080 = vsel %vm779, %v965, 0.0
      %v1081 = vadd.f32 %v1079, %v1080
      %v1082 = vsel %vm779, %v966, 0.0
      %v1083 = vadd.f32 %v1081, %v1082
      %v1084 = vsel %vm779, %v967, 0.0
      %v1085 = vadd.f32 %v1083, %v1084
      %v1086 = vsel %vm779, %v968, 0.0
      %v1087 = vadd.f32 %v1085, %v1086
      %v1088 = vsel %vm779, %v969, 0.0
      %v1089 = vadd.f32 %v1087, %v1088
      %v1090 = vsel %vm779, %v970, 0.0
      %v1091 = vadd.f32 %v1089, %v1090
      %v1092 = vsel %vm779, %v971, 0.0
      %v1093 = vadd.f32 %v1091, %v1092
      %v1094 = vsel %vm779, %v972, 0.0
      %v1095 = vadd.f32 %v1093, %v1094
      %v1096 = vsel %vm779, %v973, 0.0
      %v1097 = vadd.f32 %v1095, %v1096
      %v1098 = vsel %vm779, %v974, 0.0
      %v1099 = vadd.f32 %v1097, %v1098
      %v1100 = vsel %vm779, %v975, 0.0
      %v1101 = vadd.f32 %v1099, %v1100
      %v1102 = vsel %vm779, %v976, 0.0
      %v1103 = vadd.f32 %v1101, %v1102
      %v1104 = vrot.slane %v1103, 4
      %v1105 = vadd.f32 %v1103, %v1104
      %v1106 = vrot.slane %v1105, 2
      %v1107 = vadd.f32 %v1105, %v1106
      %v1108 = vrot.slane %v1107, 1
      %v1109 = vadd.f32 %v1107, %v1108
      %vm1110 = vcmask 1040384
      %v1111 = vsel %vm1110, %v912, %v1109
      %v1112 = vsel %vm486, %v1111, 0.0
      %1113 = vst.msk [vmem:[%s143] sm:$0xff] %vm779, %v1112
      %p1114 = scmp.lt.s32.totalorder %s13, 1
      %s1115 = scalar_select %p1114, %s13, 1
      %s1116 = smul.addr %s1115, 8
      %s1117 = scalar_lea.vmem %s2, %s1116
      // Predicated region
      $region29: #{sphere_block_3d.2} parent=27 // pred_check
        %p1118 = pneg %p78
      $region30: #{sphere_block_3d.2} parent=27 // pred_check_branch
        %1120 = sbr.rel (%p1118) target = $region32
      $region31: #{sphere_block_3d.2} parent=27 // pred_region
        _
      $region32: #{sphere_block_3d.2} parent=27 // pred_fallthru
        _
    $region28: #{sphere_block_3d.2} parent=5 // pred_fallthru
      _
    %p1121 = scmp.le.s32.totalorder 2, %s8
    // Predicated region
    $region33: #{sphere_block_3d.2} parent=5 // pred_check
      %p1122 = pneg %p1121
    $region34: #{sphere_block_3d.2} parent=5 // pred_check_branch
      %1124 = sbr.rel (%p1122) target = $region36
    $region35: #{sphere_block_3d.2} parent=5 // pred_region
      %s1125 = ssub.s32 %s8, 2
      // Predicated region
      $region37: #{sphere_block_3d.2} parent=35 // pred_check
        %p1126 = pneg %p84
      $region38: #{sphere_block_3d.2} parent=35 // pred_check_branch
        %1128 = sbr.rel (%p1126) target = $region40
      $region39: #{sphere_block_3d.2} parent=35 // pred_region
        %p1129 = scmp.lt.s32.totalorder %s14, 1
        %s1130 = scalar_select %p1129, %s14, 1
        %s1131 = smul.addr %s1130, 8
        %s1132 = scalar_lea.vmem %s2, %s1131
      $region40: #{sphere_block_3d.2} parent=35 // pred_fallthru
        _
    $region36: #{sphere_block_3d.2} parent=5 // pred_fallthru
      _
  $region6: #{sphere_block_3d.2} parent=0 // loop_footer
    %s12 = sadd.s32 1, %s8
  $region7: #{sphere_block_3d.2} parent=0 // loop_footer_branch
    %7 = sbr.rel target = $region3
  $region8: #{sphere_block_3d.2} parent=0 // loop_exit
    _

// kernel: sphere_block_3d.3
$region0: #{sphere_block_3d.3}
  #allocation0 [shape = 'u32[]', space=smem, size = 0x4, offset = 0x4, fixed_abs, tag = 'smem constant byte address 0x4 - core index']
  #allocation1 [shape = 'u32[144,128]{1,0:T(1,128)}', space=vmem, size = 0x12000, scoped, tag = 'internal scratch']
  %s0 = inlined_call_operand.vmem [shape: bf16[1024,36], index: 0, kind: input, shape index: {}]
  %s1 = inlined_call_operand.vmem [shape: bf16[36,8], index: 1, kind: input, shape index: {}]
  %s2 = inlined_call_operand.vmem [shape: f32[1,8], index: 2, kind: input, shape index: {}]
  %s3 = inlined_call_operand.vmem [shape: f32[1,8], index: 3, kind: input, shape index: {}]
  %s4 = inlined_call_operand.vmem [shape: f32[1024,8], index: 4, kind: output, shape index: {}]
  %s5 = sld [smem:[#allocation0]]
  $region49: #{sphere_block_3d.3} parent=0
    _
  %s7 = ssub.s32 1, %s5
  %s8 = scalar_select 0, %s7, %s5
  loop: start=0, step=1, limit=4
  $region2: #{sphere_block_3d.3} parent=0 // loop_pre_header
    _
  $region3: #{sphere_block_3d.3} parent=0 // loop_header
    %s10 = sphi 0, %s14
    %p11 = scmp.ge.s32.totalorder %s10, 4
    %s20 = sphi 0, %s22
    %s23 = sphi 0, %s20
    %s24 = sphi 0, %s23
    %s40 = sphi 0, %s24
    %s44 = sphi 0, %s44
    %s46 = sphi 0, %s44
    %s47 = sphi 0, %s46
    %s61 = sphi 0, %s47
    %s65 = sphi 0, %s65
    %s67 = sphi 0, %s65
    %s68 = sphi 0, %s67
    %s82 = sphi 0, %s68
    %s86 = sphi 0, %s86
    %s88 = sphi 0, %s86
    %s89 = sphi 0, %s88
    %s103 = sphi 0, %s89
    %s109 = sphi 0, %s111
    %s112 = sphi 0, %s109
    %s113 = sphi 0, %s112
    %s129 = sphi 0, %s113
  $region4: #{sphere_block_3d.3} parent=0 // loop_header_branch
    %13 = sbr.rel (%p11) target = $region8
  $region5: #{sphere_block_3d.3} parent=0 // loop_body
    %s15 = ssub.s32 %s10, 1
    %s16 = ssub.s32 %s10, 2
    %s17 = sadd.s32 %s10, 1
    %s18 = ssub.s32 %s10, %s17
    %p19 = scmp.eq.s32.totalorder %s18, 0
    %s21 = sadd.s32 %s20, 1
    %s22 = scalar_select %p19, %s20, %s21
    %p25 = pneg %p19
    %p26 = scmp.eq.s32.totalorder %s10, 1
    %p27 = por %p25, %p26
    %p28 = scmp.ne.s32.totalorder %s20, %s23
    %p29 = scmp.eq.s32.totalorder %s10, 0
    %p30 = por %p28, %p29
    %p31 = scmp.ne.s32.totalorder %s20, %s23
    %p32 = scmp.eq.s32.totalorder %s15, 1
    %p33 = por %p31, %p32
    %p34 = scmp.ne.s32.totalorder %s23, %s24
    %p35 = scmp.eq.s32.totalorder %s15, 0
    %p36 = por %p34, %p35
    %p37 = scmp.ne.s32.totalorder %s23, %s24
    %p38 = scmp.eq.s32.totalorder %s16, 1
    %p39 = por %p37, %p38
    %p41 = scmp.ne.s32.totalorder %s24, %s40
    %p42 = scmp.eq.s32.totalorder %s16, 0
    %p43 = por %p41, %p42
    %s45 = sadd.s32 %s44, 1
    %p48 = scmp.eq.s32.totalorder %s10, 1
    %p49 = scmp.ne.s32.totalorder %s44, %s46
    %p50 = scmp.eq.s32.totalorder %s10, 0
    %p51 = por %p49, %p50
    %p52 = scmp.ne.s32.totalorder %s44, %s46
    %p53 = scmp.eq.s32.totalorder %s15, 1
    %p54 = por %p52, %p53
    %p55 = scmp.ne.s32.totalorder %s46, %s47
    %p56 = scmp.eq.s32.totalorder %s15, 0
    %p57 = por %p55, %p56
    %p58 = scmp.ne.s32.totalorder %s46, %s47
    %p59 = scmp.eq.s32.totalorder %s16, 1
    %p60 = por %p58, %p59
    %p62 = scmp.ne.s32.totalorder %s47, %s61
    %p63 = scmp.eq.s32.totalorder %s16, 0
    %p64 = por %p62, %p63
    %s66 = sadd.s32 %s65, 1
    %p69 = scmp.eq.s32.totalorder %s10, 1
    %p70 = scmp.ne.s32.totalorder %s65, %s67
    %p71 = scmp.eq.s32.totalorder %s10, 0
    %p72 = por %p70, %p71
    %p73 = scmp.ne.s32.totalorder %s65, %s67
    %p74 = scmp.eq.s32.totalorder %s15, 1
    %p75 = por %p73, %p74
    %p76 = scmp.ne.s32.totalorder %s67, %s68
    %p77 = scmp.eq.s32.totalorder %s15, 0
    %p78 = por %p76, %p77
    %p79 = scmp.ne.s32.totalorder %s67, %s68
    %p80 = scmp.eq.s32.totalorder %s16, 1
    %p81 = por %p79, %p80
    %p83 = scmp.ne.s32.totalorder %s68, %s82
    %p84 = scmp.eq.s32.totalorder %s16, 0
    %p85 = por %p83, %p84
    %s87 = sadd.s32 %s86, 1
    %p90 = scmp.eq.s32.totalorder %s10, 1
    %p91 = scmp.ne.s32.totalorder %s86, %s88
    %p92 = scmp.eq.s32.totalorder %s10, 0
    %p93 = por %p91, %p92
    %p94 = scmp.ne.s32.totalorder %s86, %s88
    %p95 = scmp.eq.s32.totalorder %s15, 1
    %p96 = por %p94, %p95
    %p97 = scmp.ne.s32.totalorder %s88, %s89
    %p98 = scmp.eq.s32.totalorder %s15, 0
    %p99 = por %p97, %p98
    %p100 = scmp.ne.s32.totalorder %s88, %s89
    %p101 = scmp.eq.s32.totalorder %s16, 1
    %p102 = por %p100, %p101
    %p104 = scmp.ne.s32.totalorder %s89, %s103
    %p105 = scmp.eq.s32.totalorder %s16, 0
    %p106 = por %p104, %p105
    %s107 = ssub.s32 %s10, %s17
    %p108 = scmp.eq.s32.totalorder %s107, 0
    %s110 = sadd.s32 %s109, 1
    %s111 = scalar_select %p108, %s109, %s110
    %p114 = pneg %p108
    %p115 = scmp.eq.s32.totalorder %s10, 1
    %p116 = por %p114, %p115
    %p117 = scmp.ne.s32.totalorder %s109, %s112
    %p118 = scmp.eq.s32.totalorder %s10, 0
    %p119 = por %p117, %p118
    %p120 = scmp.ne.s32.totalorder %s109, %s112
    %p121 = scmp.eq.s32.totalorder %s15, 1
    %p122 = por %p120, %p121
    %p123 = scmp.ne.s32.totalorder %s112, %s113
    %p124 = scmp.eq.s32.totalorder %s15, 0
    %p125 = por %p123, %p124
    %p126 = scmp.ne.s32.totalorder %s112, %s113
    %p127 = scmp.eq.s32.totalorder %s16, 1
    %p128 = por %p126, %p127
    %p130 = scmp.ne.s32.totalorder %s113, %s129
    %p131 = scmp.eq.s32.totalorder %s16, 0
    %p132 = por %p130, %p131
    %p133 = scmp.le.s32.totalorder 1, %s10
    %p134 = scmp.lt.s32.totalorder %s10, 3
    %p135 = pnand %p133, %p134
    %p136 = pneg %p135
    // Predicated region
    $region9: #{sphere_block_3d.3} parent=5 // pred_check
      _
    $region10: #{sphere_block_3d.3} parent=5 // pred_check_branch
      %138 = sbr.rel (%p135) target = $region12
    $region11: #{sphere_block_3d.3} parent=5 // pred_region
      %s139 = ssub.s32 %s10, 1
      // Predicated region
      $region13: #{sphere_block_3d.3} parent=11 // pred_check
        %p140 = pneg %p57
      $region14: #{sphere_block_3d.3} parent=11 // pred_check_branch
        %142 = sbr.rel (%p140) target = $region16
      $region15: #{sphere_block_3d.3} parent=11 // pred_region
        _
      $region16: #{sphere_block_3d.3} parent=11 // pred_fallthru
        _
      // Predicated region
      $region17: #{sphere_block_3d.3} parent=11 // pred_check
        %p143 = pneg %p78
      $region18: #{sphere_block_3d.3} parent=11 // pred_check_branch
        %145 = sbr.rel (%p143) target = $region20
      $region19: #{sphere_block_3d.3} parent=11 // pred_region
        _
      $region20: #{sphere_block_3d.3} parent=11 // pred_fallthru
        _
      // Predicated region
      $region21: #{sphere_block_3d.3} parent=11 // pred_check
        %p146 = pneg %p99
      $region22: #{sphere_block_3d.3} parent=11 // pred_check_branch
        %148 = sbr.rel (%p146) target = $region24
      $region23: #{sphere_block_3d.3} parent=11 // pred_region
        _
      $region24: #{sphere_block_3d.3} parent=11 // pred_fallthru
        _
    $region12: #{sphere_block_3d.3} parent=5 // pred_fallthru
      _
    %p149 = scmp.lt.s32.totalorder %s10, 2
    // Predicated region
    $region25: #{sphere_block_3d.3} parent=5 // pred_check
      %p150 = pneg %p149
    $region26: #{sphere_block_3d.3} parent=5 // pred_check_branch
      %152 = sbr.rel (%p150) target = $region28
    $region27: #{sphere_block_3d.3} parent=5 // pred_region
      // Predicated region
      $region29: #{sphere_block_3d.3} parent=27 // pred_check
        %p153 = pneg %p30
      $region30: #{sphere_block_3d.3} parent=27 // pred_check_branch
        %155 = sbr.rel (%p153) target = $region32
      $region31: #{sphere_block_3d.3} parent=27 // pred_region
        %s156 = smul.u32 64, %s10
        %p157 = scmp.lt.s32.totalorder %s156, 127
        %s158 = scalar_select %p157, %s156, 127
        %s159 = smul.addr %s158, 4
        %s160 = scalar_lea.vmem %s0, %s159
        %s161 = smul.u32 64, %s10
      $region32: #{sphere_block_3d.3} parent=27 // pred_fallthru
        _
    $region28: #{sphere_block_3d.3} parent=5 // pred_fallthru
      _
    %p162 = scmp.le.s32.totalorder 1, %s10
    %p163 = scmp.lt.s32.totalorder %s10, 3
    %p164 = pnand %p162, %p163
    %p165 = pneg %p164
    // Predicated region
    $region33: #{sphere_block_3d.3} parent=5 // pred_check
      _
    $region34: #{sphere_block_3d.3} parent=5 // pred_check_branch
      %167 = sbr.rel (%p164) target = $region36
    $region35: #{sphere_block_3d.3} parent=5 // pred_region
      %s168 = ssub.s32 %s10, 1
      %s169 = smul.u32 64, %s15
      %p170 = scmp.lt.s32.totalorder %s169, 127
      %s171 = scalar_select %p170, %s169, 127
      %s172 = smul.addr %s171, 4
      %s173 = scalar_lea.vmem %s0, %s172
      %p174 = pneg %p36
      %p175 = pneg %p33
      %p176 = pneg %p57
      %p177 = pneg %p54
      %p178 = pneg %p78
      %p179 = pneg %p75
      %p180 = pneg %p99
      %p181 = pneg %p96
      %p182 = pneg %p125
      %p183 = pneg %p122
      %s184 = smul.u32 64, %s15
      %p185 = scmp.lt.s32.totalorder %s184, 127
      %s186 = scalar_select %p185, %s184, 127
      %s187 = smul.addr %s186, 8
      %s188 = scalar_lea.vmem %s4, %s187
      %s189 = smul.u32 64, %s15
      %p190 = scmp.lt.s32.totalorder %s189, 127
      %s191 = scalar_select %p190, %s189, 127
      %s192 = smul.addr %s191, 4
      %s193 = scalar_lea.vmem %s0, %s192
      %s194 = smul.u32 64, %s15
      %s195 = smul.u32 64, %s15
      %p196 = scmp.lt.s32.totalorder %s195, 127
      %s197 = scalar_select %p196, %s195, 127
      %s198 = smul.addr %s197, 8
      %s199 = scalar_lea.vmem %s4, %s198
      %s200 = smul.u32 64, %s15
      %v202 = vld [vmem:[%s193] sm:$0xf]
      %v203 = vld [vmem:[%s193 + $0x4] sm:$0xf]
      %v204 = vld [vmem:[%s193 + $0x8] sm:$0xf]
      %v205 = vld [vmem:[%s193 + $0xc] sm:$0xf]
      %v206 = vld [vmem:[%s193 + $0x10] sm:$0xf]
      %v207 = vld [vmem:[%s193 + $0x14] sm:$0xf]
      %v208 = vld [vmem:[%s193 + $0x18] sm:$0xf]
      %v209 = vld [vmem:[%s193 + $0x1c] sm:$0xf]
      %v210 = vld [vmem:[%s193 + $0x20] sm:$0xf]
      %v211 = vld [vmem:[%s193 + $0x24] sm:$0xf]
      %v212 = vld [vmem:[%s193 + $0x28] sm:$0xf]
      %v213 = vld [vmem:[%s193 + $0x2c] sm:$0xf]
      %v214 = vld [vmem:[%s193 + $0x30] sm:$0xf]
      %v215 = vld [vmem:[%s193 + $0x34] sm:$0xf]
      %v216 = vld [vmem:[%s193 + $0x38] sm:$0xf]
      %v217 = vld [vmem:[%s193 + $0x3c] sm:$0xf]
      %v218 = vld [vmem:[%s193 + $0x40] sm:$0xf]
      %v219 = vld [vmem:[%s193 + $0x44] sm:$0xf]
      %v220 = vld [vmem:[%s193 + $0x48] sm:$0xf]
      %v221 = vld [vmem:[%s193 + $0x4c] sm:$0xf]
      %v222 = vld [vmem:[%s193 + $0x50] sm:$0xf]
      %v223 = vld [vmem:[%s193 + $0x54] sm:$0xf]
      %v224 = vld [vmem:[%s193 + $0x58] sm:$0xf]
      %v225 = vld [vmem:[%s193 + $0x5c] sm:$0xf]
      %v226 = vld [vmem:[%s193 + $0x60] sm:$0xf]
      %v227 = vld [vmem:[%s193 + $0x64] sm:$0xf]
      %v228 = vld [vmem:[%s193 + $0x68] sm:$0xf]
      %v229 = vld [vmem:[%s193 + $0x6c] sm:$0xf]
      %v230 = vld [vmem:[%s193 + $0x70] sm:$0xf]
      %v231 = vld [vmem:[%s193 + $0x74] sm:$0xf]
      %v232 = vld [vmem:[%s193 + $0x78] sm:$0xf]
      %v233 = vld [vmem:[%s193 + $0x7c] sm:$0xf]
      %v234 = vld [vmem:[%s193 + $0x80] sm:$0xf]
      %v235 = vld [vmem:[%s193 + $0x84] sm:$0xf]
      %v236 = vld [vmem:[%s193 + $0x88] sm:$0xf]
      %v237 = vld [vmem:[%s193 + $0x8c] sm:$0xf]
      %v238 = vld [vmem:[%s193 + $0x90] sm:$0xf]
      %v239 = vld [vmem:[%s193 + $0x94] sm:$0xf]
      %v240 = vld [vmem:[%s193 + $0x98] sm:$0xf]
      %v241 = vld [vmem:[%s193 + $0x9c] sm:$0xf]
      %v242 = vld [vmem:[%s193 + $0xa0] sm:$0xf]
      %v243 = vld [vmem:[%s193 + $0xa4] sm:$0xf]
      %v244 = vld [vmem:[%s193 + $0xa8] sm:$0xf]
      %v245 = vld [vmem:[%s193 + $0xac] sm:$0xf]
      %v246 = vld [vmem:[%s193 + $0xb0] sm:$0xf]
      %v247 = vld [vmem:[%s193 + $0xb4] sm:$0xf]
      %v248 = vld [vmem:[%s193 + $0xb8] sm:$0xf]
      %v249 = vld [vmem:[%s193 + $0xbc] sm:$0xf]
      %v250 = vld [vmem:[%s193 + $0xc0] sm:$0xf]
      %v251 = vld [vmem:[%s193 + $0xc4] sm:$0xf]
      %v252 = vld [vmem:[%s193 + $0xc8] sm:$0xf]
      %v253 = vld [vmem:[%s193 + $0xcc] sm:$0xf]
      %v254 = vld [vmem:[%s193 + $0xd0] sm:$0xf]
      %v255 = vld [vmem:[%s193 + $0xd4] sm:$0xf]
      %v256 = vld [vmem:[%s193 + $0xd8] sm:$0xf]
      %v257 = vld [vmem:[%s193 + $0xdc] sm:$0xf]
      %v258 = vld [vmem:[%s193 + $0xe0] sm:$0xf]
      %v259 = vld [vmem:[%s193 + $0xe4] sm:$0xf]
      %v260 = vld [vmem:[%s193 + $0xe8] sm:$0xf]
      %v261 = vld [vmem:[%s193 + $0xec] sm:$0xf]
      %v262 = vld [vmem:[%s193 + $0xf0] sm:$0xf]
      %v263 = vld [vmem:[%s193 + $0xf4] sm:$0xf]
      %v264 = vld [vmem:[%s193 + $0xf8] sm:$0xf]
      %v265 = vld [vmem:[%s193 + $0xfc] sm:$0xf]
      %v266 = vld [vmem:[%s1] sm:$0xf]
      %v267 = vld [vmem:[%s1 + $0x4] sm:$0xf]
      %v268 = vld [vmem:[%s1 + $0x8] sm:$0xf]
      %v269 = vld [vmem:[%s1 + $0xc] sm:$0xf]
      %v270 = vld [vmem:[%s1 + $0x10] sm:$0x3]
      %v335 = vunpack.c.l.b16 %v202
      %v336 = vunpack.c.l.b16 %v203
      %v337 = vunpack.c.l.b16 %v204
      %v338 = vunpack.c.l.b16 %v205
      %v339 = vunpack.c.l.b16 %v206
      %v340 = vunpack.c.l.b16 %v207
      %v341 = vunpack.c.l.b16 %v208
      %v342 = vunpack.c.l.b16 %v209
      %v343 = vunpack.c.l.b16 %v210
      %v344 = vunpack.c.l.b16 %v211
      %v345 = vunpack.c.l.b16 %v212
      %v346 = vunpack.c.l.b16 %v213
      %v347 = vunpack.c.l.b16 %v214
      %v348 = vunpack.c.l.b16 %v215
      %v349 = vunpack.c.l.b16 %v216
      %v350 = vunpack.c.l.b16 %v217
      %v351 = vunpack.c.l.b16 %v218
      %v352 = vunpack.c.l.b16 %v219
      %v353 = vunpack.c.l.b16 %v220
      %v354 = vunpack.c.l.b16 %v221
      %v355 = vunpack.c.l.b16 %v222
      %v356 = vunpack.c.l.b16 %v223
      %v357 = vunpack.c.l.b16 %v224
      %v358 = vunpack.c.l.b16 %v225
      %v359 = vunpack.c.l.b16 %v226
      %v360 = vunpack.c.l.b16 %v227
      %v361 = vunpack.c.l.b16 %v228
      %v362 = vunpack.c.l.b16 %v229
      %v363 = vunpack.c.l.b16 %v230
      %v364 = vunpack.c.l.b16 %v231
      %v365 = vunpack.c.l.b16 %v232
      %v366 = vunpack.c.l.b16 %v233
      %v367 = vunpack.c.l.b16 %v234
      %v368 = vunpack.c.l.b16 %v235
      %v369 = vunpack.c.l.b16 %v236
      %v370 = vunpack.c.l.b16 %v237
      %v371 = vunpack.c.l.b16 %v238
      %v372 = vunpack.c.l.b16 %v239
      %v373 = vunpack.c.l.b16 %v240
      %v374 = vunpack.c.l.b16 %v241
      %v375 = vunpack.c.l.b16 %v242
      %v376 = vunpack.c.l.b16 %v243
      %v377 = vunpack.c.l.b16 %v244
      %v378 = vunpack.c.l.b16 %v245
      %v379 = vunpack.c.l.b16 %v246
      %v380 = vunpack.c.l.b16 %v247
      %v381 = vunpack.c.l.b16 %v248
      %v382 = vunpack.c.l.b16 %v249
      %v383 = vunpack.c.l.b16 %v250
      %v384 = vunpack.c.l.b16 %v251
      %v385 = vunpack.c.l.b16 %v252
      %v386 = vunpack.c.l.b16 %v253
      %v387 = vunpack.c.l.b16 %v254
      %v388 = vunpack.c.l.b16 %v255
      %v389 = vunpack.c.l.b16 %v256
      %v390 = vunpack.c.l.b16 %v257
      %v391 = vunpack.c.l.b16 %v258
      %v392 = vunpack.c.l.b16 %v259
      %v393 = vunpack.c.l.b16 %v260
      %v394 = vunpack.c.l.b16 %v261
      %v395 = vunpack.c.l.b16 %v262
      %v396 = vunpack.c.l.b16 %v263
      %v397 = vunpack.c.l.b16 %v264
      %v398 = vunpack.c.l.b16 %v265
      %v399 = vpack.c.b16 %v336, %v335
      %v400 = vpack.c.b16 %v338, %v337
      %v401 = vpack.c.b16 %v340, %v339
      %v402 = vpack.c.b16 %v342, %v341
      %v403 = vpack.c.b16 %v344, %v343
      %v404 = vpack.c.b16 %v346, %v345
      %v405 = vpack.c.b16 %v348, %v347
      %v406 = vpack.c.b16 %v350, %v349
      %v407 = vpack.c.b16 %v352, %v351
      %v408 = vpack.c.b16 %v354, %v353
      %v409 = vpack.c.b16 %v356, %v355
      %v410 = vpack.c.b16 %v358, %v357
      %v411 = vpack.c.b16 %v360, %v359
      %v412 = vpack.c.b16 %v362, %v361
      %v413 = vpack.c.b16 %v364, %v363
      %v414 = vpack.c.b16 %v366, %v365
      %v415 = vpack.c.b16 %v368, %v367
      %v416 = vpack.c.b16 %v370, %v369
      %v417 = vpack.c.b16 %v372, %v371
      %v418 = vpack.c.b16 %v374, %v373
      %v419 = vpack.c.b16 %v376, %v375
      %v420 = vpack.c.b16 %v378, %v377
      %v421 = vpack.c.b16 %v380, %v379
      %v422 = vpack.c.b16 %v382, %v381
      %v423 = vpack.c.b16 %v384, %v383
      %v424 = vpack.c.b16 %v386, %v385
      %v425 = vpack.c.b16 %v388, %v387
      %v426 = vpack.c.b16 %v390, %v389
      %v427 = vpack.c.b16 %v392, %v391
      %v428 = vpack.c.b16 %v394, %v393
      %v429 = vpack.c.b16 %v396, %v395
      %v430 = vpack.c.b16 %v398, %v397
      %v436 = vunpack.c.l.b16 %v266
      %v437 = vunpack.c.l.b16 %v267
      %v438 = vunpack.c.l.b16 %v268
      %v439 = vunpack.c.l.b16 %v269
      %v440 = vunpack.c.l.b16 %v270
      %v441 = vpack.c.b16 %v437, %v436
      %v442 = vpack.c.b16 %v439, %v438
      %v443 = vpack.c.b16 %v440, %v440
      %vm446 = vcmask 293888
      %v448 = vsel %vm446, %v399, 0
      %v451 = vsel %vm446, %v400, 0
      %v454 = vsel %vm446, %v401, 0
      %v457 = vsel %vm446, %v402, 0
      %v460 = vsel %vm446, %v403, 0
      %v463 = vsel %vm446, %v404, 0
      %v466 = vsel %vm446, %v405, 0
      %v469 = vsel %vm446, %v406, 0
      %v472 = vsel %vm446, %v407, 0
      %v475 = vsel %vm446, %v408, 0
      %v478 = vsel %vm446, %v409, 0
      %v481 = vsel %vm446, %v410, 0
      %v484 = vsel %vm446, %v411, 0
      %v487 = vsel %vm446, %v412, 0
      %v490 = vsel %vm446, %v413, 0
      %v493 = vsel %vm446, %v414, 0
      %v496 = vsel %vm446, %v415, 0
      %v499 = vsel %vm446, %v416, 0
      %v502 = vsel %vm446, %v417, 0
      %v505 = vsel %vm446, %v418, 0
      %v508 = vsel %vm446, %v419, 0
      %v511 = vsel %vm446, %v420, 0
      %v514 = vsel %vm446, %v421, 0
      %v517 = vsel %vm446, %v422, 0
      %v520 = vsel %vm446, %v423, 0
      %v523 = vsel %vm446, %v424, 0
      %v526 = vsel %vm446, %v425, 0
      %v529 = vsel %vm446, %v426, 0
      %v532 = vsel %vm446, %v427, 0
      %v535 = vsel %vm446, %v428, 0
      %v538 = vsel %vm446, %v429, 0
      %v541 = vsel %vm446, %v430, 0
      %vm543 = vcmask 1041408
      %v545 = vsel %vm543, %v443, 0
      %547 = vmatprep.subr.bf16.mxu0 0
      %548 = vmatpush1.bf16.msra.mxu0 0
      %549 = vmatprep.subr.bf16.mxu0 0
      %550 = vmatpush1.bf16.msra.mxu0 0
      %551 = vmatprep.subr.bf16.mxu0 0
      %552 = vmatpush1.bf16.msra.mxu0 0
      %553 = vmatprep.subr.bf16.mxu0 0
      %554 = vmatpush1.bf16.msra.mxu0 0
      %555 = vmatprep.subr.bf16.mxu0 0
      %556 = vmatpush1.bf16.msra.mxu0 0
      %557 = vmatprep.subr.bf16.mxu0 0
      %558 = vmatpush1.bf16.msra.mxu0 %v545
      %559 = vmatprep.subr.bf16.mxu0 0
      %560 = vmatpush1.bf16.msra.mxu0 %v442
      %561 = vmatprep.subr.bf16.mxu0 0
      %562 = vmatpush1.bf16.msra.mxu0 %v441
      %563 = vmatprep.subr.bf16.mxu0 0
      %564 = vmatpush2.bf16.msra.mxu0 0
      %565 = vmatprep.subr.bf16.mxu0 0
      %566 = vmatpush2.bf16.msra.mxu0 0
      %567 = vmatprep.subr.bf16.mxu0 0
      %568 = vmatpush2.bf16.msra.mxu0 0
      %569 = vmatprep.subr.bf16.mxu0 0
      %570 = vmatpush2.bf16.msra.mxu0 0
      %571 = vmatprep.subr.bf16.mxu0 0
      %572 = vmatpush2.bf16.msra.mxu0 0
      %573 = vmatprep.subr.bf16.mxu0 0
      %574 = vmatpush2.bf16.msra.mxu0 0
      %575 = vmatprep.subr.bf16.mxu0 0
      %576 = vmatpush2.bf16.msra.mxu0 0
      %577 = vmatprep.subr.bf16.mxu0 0
      %578 = vmatpush2.bf16.msra.mxu0 0
      %579 = vmatprep.mubr.bf16.mxu0 0
      %580 = vmatmul.mubr.bf16.gmra.mxu0 %v448
      %v581 = vpop.f32.mrf.mxu0
      %v582 = vadd.f32 0.0, %v581
      %v583 = vpop.f32.mrf.mxu0
      %v584 = vpop.f32.mrf.mxu0
      %v585 = vadd.f32 0.0, %v584
      %v586 = vpop.f32.mrf.mxu0
      %587 = vmatprep.mubr.bf16.mxu0 0
      %588 = vmatmul.mubr.bf16.gmra.mxu0 %v451
      %v589 = vpop.f32.mrf.mxu0
      %v590 = vadd.f32 0.0, %v589
      %v591 = vpop.f32.mrf.mxu0
      %v592 = vpop.f32.mrf.mxu0
      %v593 = vadd.f32 0.0, %v592
      %v594 = vpop.f32.mrf.mxu0
      %595 = vmatprep.mubr.bf16.mxu0 0
      %596 = vmatmul.mubr.bf16.gmra.mxu0 %v454
      %v597 = vpop.f32.mrf.mxu0
      %v598 = vadd.f32 0.0, %v597
      %v599 = vpop.f32.mrf.mxu0
      %v600 = vpop.f32.mrf.mxu0
      %v601 = vadd.f32 0.0, %v600
      %v602 = vpop.f32.mrf.mxu0
      %603 = vmatprep.mubr.bf16.mxu0 0
      %604 = vmatmul.mubr.bf16.gmra.mxu0 %v457
      %v605 = vpop.f32.mrf.mxu0
      %v606 = vadd.f32 0.0, %v605
      %v607 = vpop.f32.mrf.mxu0
      %v608 = vpop.f32.mrf.mxu0
      %v609 = vadd.f32 0.0, %v608
      %v610 = vpop.f32.mrf.mxu0
      %611 = vmatprep.mubr.bf16.mxu0 0
      %612 = vmatmul.mubr.bf16.gmra.mxu0 %v460
      %v613 = vpop.f32.mrf.mxu0
      %v614 = vadd.f32 0.0, %v613
      %v615 = vpop.f32.mrf.mxu0
      %v616 = vpop.f32.mrf.mxu0
      %v617 = vadd.f32 0.0, %v616
      %v618 = vpop.f32.mrf.mxu0
      %619 = vmatprep.mubr.bf16.mxu0 0
      %620 = vmatmul.mubr.bf16.gmra.mxu0 %v463
      %v621 = vpop.f32.mrf.mxu0
      %v622 = vadd.f32 0.0, %v621
      %v623 = vpop.f32.mrf.mxu0
      %v624 = vpop.f32.mrf.mxu0
      %v625 = vadd.f32 0.0, %v624
      %v626 = vpop.f32.mrf.mxu0
      %627 = vmatprep.mubr.bf16.mxu0 0
      %628 = vmatmul.mubr.bf16.gmra.mxu0 %v466
      %v629 = vpop.f32.mrf.mxu0
      %v630 = vadd.f32 0.0, %v629
      %v631 = vpop.f32.mrf.mxu0
      %v632 = vpop.f32.mrf.mxu0
      %v633 = vadd.f32 0.0, %v632
      %v634 = vpop.f32.mrf.mxu0
      %635 = vmatprep.mubr.bf16.mxu0 0
      %636 = vmatmul.mubr.bf16.gmra.mxu0 %v469
      %v637 = vpop.f32.mrf.mxu0
      %v638 = vadd.f32 0.0, %v637
      %v639 = vpop.f32.mrf.mxu0
      %v640 = vpop.f32.mrf.mxu0
      %v641 = vadd.f32 0.0, %v640
      %v642 = vpop.f32.mrf.mxu0
      %643 = vmatprep.mubr.bf16.mxu0 0
      %644 = vmatmul.mubr.bf16.gmra.mxu0 %v472
      %v645 = vpop.f32.mrf.mxu0
      %v646 = vadd.f32 0.0, %v645
      %v647 = vpop.f32.mrf.mxu0
      %v648 = vpop.f32.mrf.mxu0
      %v649 = vadd.f32 0.0, %v648
      %v650 = vpop.f32.mrf.mxu0
      %651 = vmatprep.mubr.bf16.mxu0 0
      %652 = vmatmul.mubr.bf16.gmra.mxu0 %v475
      %v653 = vpop.f32.mrf.mxu0
      %v654 = vadd.f32 0.0, %v653
      %v655 = vpop.f32.mrf.mxu0
      %v656 = vpop.f32.mrf.mxu0
      %v657 = vadd.f32 0.0, %v656
      %v658 = vpop.f32.mrf.mxu0
      %659 = vmatprep.mubr.bf16.mxu0 0
      %660 = vmatmul.mubr.bf16.gmra.mxu0 %v478
      %v661 = vpop.f32.mrf.mxu0
      %v662 = vadd.f32 0.0, %v661
      %v663 = vpop.f32.mrf.mxu0
      %v664 = vpop.f32.mrf.mxu0
      %v665 = vadd.f32 0.0, %v664
      %v666 = vpop.f32.mrf.mxu0
      %667 = vmatprep.mubr.bf16.mxu0 0
      %668 = vmatmul.mubr.bf16.gmra.mxu0 %v481
      %v669 = vpop.f32.mrf.mxu0
      %v670 = vadd.f32 0.0, %v669
      %v671 = vpop.f32.mrf.mxu0
      %v672 = vpop.f32.mrf.mxu0
      %v673 = vadd.f32 0.0, %v672
      %v674 = vpop.f32.mrf.mxu0
      %675 = vmatprep.mubr.bf16.mxu0 0
      %676 = vmatmul.mubr.bf16.gmra.mxu0 %v484
      %v677 = vpop.f32.mrf.mxu0
      %v678 = vadd.f32 0.0, %v677
      %v679 = vpop.f32.mrf.mxu0
      %v680 = vpop.f32.mrf.mxu0
      %v681 = vadd.f32 0.0, %v680
      %v682 = vpop.f32.mrf.mxu0
      %683 = vmatprep.mubr.bf16.mxu0 0
      %684 = vmatmul.mubr.bf16.gmra.mxu0 %v487
      %v685 = vpop.f32.mrf.mxu0
      %v686 = vadd.f32 0.0, %v685
      %v687 = vpop.f32.mrf.mxu0
      %v688 = vpop.f32.mrf.mxu0
      %v689 = vadd.f32 0.0, %v688
      %v690 = vpop.f32.mrf.mxu0
      %691 = vmatprep.mubr.bf16.mxu0 0
      %692 = vmatmul.mubr.bf16.gmra.mxu0 %v490
      %v693 = vpop.f32.mrf.mxu0
      %v694 = vadd.f32 0.0, %v693
      %v695 = vpop.f32.mrf.mxu0
      %v696 = vpop.f32.mrf.mxu0
      %v697 = vadd.f32 0.0, %v696
      %v698 = vpop.f32.mrf.mxu0
      %699 = vmatprep.mubr.bf16.mxu0 0
      %700 = vmatmul.mubr.bf16.gmra.mxu0 %v493
      %v701 = vpop.f32.mrf.mxu0
      %v702 = vadd.f32 0.0, %v701
      %v703 = vpop.f32.mrf.mxu0
      %v704 = vpop.f32.mrf.mxu0
      %v705 = vadd.f32 0.0, %v704
      %v706 = vpop.f32.mrf.mxu0
      %707 = vmatprep.mubr.bf16.mxu0 0
      %708 = vmatmul.mubr.bf16.gmra.mxu0 %v496
      %v709 = vpop.f32.mrf.mxu0
      %v710 = vadd.f32 0.0, %v709
      %v711 = vpop.f32.mrf.mxu0
      %v712 = vpop.f32.mrf.mxu0
      %v713 = vadd.f32 0.0, %v712
      %v714 = vpop.f32.mrf.mxu0
      %715 = vmatprep.mubr.bf16.mxu0 0
      %716 = vmatmul.mubr.bf16.gmra.mxu0 %v499
      %v717 = vpop.f32.mrf.mxu0
      %v718 = vadd.f32 0.0, %v717
      %v719 = vpop.f32.mrf.mxu0
      %v720 = vpop.f32.mrf.mxu0
      %v721 = vadd.f32 0.0, %v720
      %v722 = vpop.f32.mrf.mxu0
      %723 = vmatprep.mubr.bf16.mxu0 0
      %724 = vmatmul.mubr.bf16.gmra.mxu0 %v502
      %v725 = vpop.f32.mrf.mxu0
      %v726 = vadd.f32 0.0, %v725
      %v727 = vpop.f32.mrf.mxu0
      %v728 = vpop.f32.mrf.mxu0
      %v729 = vadd.f32 0.0, %v728
      %v730 = vpop.f32.mrf.mxu0
      %731 = vmatprep.mubr.bf16.mxu0 0
      %732 = vmatmul.mubr.bf16.gmra.mxu0 %v505
      %v733 = vpop.f32.mrf.mxu0
      %v734 = vadd.f32 0.0, %v733
      %v735 = vpop.f32.mrf.mxu0
      %v736 = vpop.f32.mrf.mxu0
      %v737 = vadd.f32 0.0, %v736
      %v738 = vpop.f32.mrf.mxu0
      %739 = vmatprep.mubr.bf16.mxu0 0
      %740 = vmatmul.mubr.bf16.gmra.mxu0 %v508
      %v741 = vpop.f32.mrf.mxu0
      %v742 = vadd.f32 0.0, %v741
      %v743 = vpop.f32.mrf.mxu0
      %v744 = vpop.f32.mrf.mxu0
      %v745 = vadd.f32 0.0, %v744
      %v746 = vpop.f32.mrf.mxu0
      %747 = vmatprep.mubr.bf16.mxu0 0
      %748 = vmatmul.mubr.bf16.gmra.mxu0 %v511
      %v749 = vpop.f32.mrf.mxu0
      %v750 = vadd.f32 0.0, %v749
      %v751 = vpop.f32.mrf.mxu0
      %v752 = vpop.f32.mrf.mxu0
      %v753 = vadd.f32 0.0, %v752
      %v754 = vpop.f32.mrf.mxu0
      %755 = vmatprep.mubr.bf16.mxu0 0
      %756 = vmatmul.mubr.bf16.gmra.mxu0 %v514
      %v757 = vpop.f32.mrf.mxu0
      %v758 = vadd.f32 0.0, %v757
      %v759 = vpop.f32.mrf.mxu0
      %v760 = vpop.f32.mrf.mxu0
      %v761 = vadd.f32 0.0, %v760
      %v762 = vpop.f32.mrf.mxu0
      %763 = vmatprep.mubr.bf16.mxu0 0
      %764 = vmatmul.mubr.bf16.gmra.mxu0 %v517
      %v765 = vpop.f32.mrf.mxu0
      %v766 = vadd.f32 0.0, %v765
      %v767 = vpop.f32.mrf.mxu0
      %v768 = vpop.f32.mrf.mxu0
      %v769 = vadd.f32 0.0, %v768
      %v770 = vpop.f32.mrf.mxu0
      %771 = vmatprep.mubr.bf16.mxu0 0
      %772 = vmatmul.mubr.bf16.gmra.mxu0 %v520
      %v773 = vpop.f32.mrf.mxu0
      %v774 = vadd.f32 0.0, %v773
      %v775 = vpop.f32.mrf.mxu0
      %v776 = vpop.f32.mrf.mxu0
      %v777 = vadd.f32 0.0, %v776
      %v778 = vpop.f32.mrf.mxu0
      %779 = vmatprep.mubr.bf16.mxu0 0
      %780 = vmatmul.mubr.bf16.gmra.mxu0 %v523
      %v781 = vpop.f32.mrf.mxu0
      %v782 = vadd.f32 0.0, %v781
      %v783 = vpop.f32.mrf.mxu0
      %v784 = vpop.f32.mrf.mxu0
      %v785 = vadd.f32 0.0, %v784
      %v786 = vpop.f32.mrf.mxu0
      %787 = vmatprep.mubr.bf16.mxu0 0
      %788 = vmatmul.mubr.bf16.gmra.mxu0 %v526
      %v789 = vpop.f32.mrf.mxu0
      %v790 = vadd.f32 0.0, %v789
      %v791 = vpop.f32.mrf.mxu0
      %v792 = vpop.f32.mrf.mxu0
      %v793 = vadd.f32 0.0, %v792
      %v794 = vpop.f32.mrf.mxu0
      %795 = vmatprep.mubr.bf16.mxu0 0
      %796 = vmatmul.mubr.bf16.gmra.mxu0 %v529
      %v797 = vpop.f32.mrf.mxu0
      %v798 = vadd.f32 0.0, %v797
      %v799 = vpop.f32.mrf.mxu0
      %v800 = vpop.f32.mrf.mxu0
      %v801 = vadd.f32 0.0, %v800
      %v802 = vpop.f32.mrf.mxu0
      %803 = vmatprep.mubr.bf16.mxu0 0
      %804 = vmatmul.mubr.bf16.gmra.mxu0 %v532
      %v805 = vpop.f32.mrf.mxu0
      %v806 = vadd.f32 0.0, %v805
      %v807 = vpop.f32.mrf.mxu0
      %v808 = vpop.f32.mrf.mxu0
      %v809 = vadd.f32 0.0, %v808
      %v810 = vpop.f32.mrf.mxu0
      %811 = vmatprep.mubr.bf16.mxu0 0
      %812 = vmatmul.mubr.bf16.gmra.mxu0 %v535
      %v813 = vpop.f32.mrf.mxu0
      %v814 = vadd.f32 0.0, %v813
      %v815 = vpop.f32.mrf.mxu0
      %v816 = vpop.f32.mrf.mxu0
      %v817 = vadd.f32 0.0, %v816
      %v818 = vpop.f32.mrf.mxu0
      %819 = vmatprep.mubr.bf16.mxu0 0
      %820 = vmatmul.mubr.bf16.gmra.mxu0 %v538
      %v821 = vpop.f32.mrf.mxu0
      %v822 = vadd.f32 0.0, %v821
      %v823 = vpop.f32.mrf.mxu0
      %v824 = vpop.f32.mrf.mxu0
      %v825 = vadd.f32 0.0, %v824
      %v826 = vpop.f32.mrf.mxu0
      %827 = vmatprep.mubr.bf16.mxu0 0
      %828 = vmatmul.mubr.bf16.gmra.mxu0 %v541
      %v829 = vpop.f32.mrf.mxu0
      %v830 = vadd.f32 0.0, %v829
      %v831 = vpop.f32.mrf.mxu0
      %v832 = vpop.f32.mrf.mxu0
      %v833 = vadd.f32 0.0, %v832
      %v834 = vpop.f32.mrf.mxu0
      %835 = vdwg.mxu0
      %v836 = vld [vmem:[%s2] sm:$0x1]
      %v838 = vlaneseq
      %v839 = vshrl.u32 %v838, 7
      %v840 = vsub.s32 0, %v839
      %v841 = vrot.slane %v836, %v840
      %v843 = vmul.f32 %v582, %v841
      %v844 = vmul.f32 %v585, %v841
      %v845 = vmul.f32 %v590, %v841
      %v846 = vmul.f32 %v593, %v841
      %v847 = vmul.f32 %v598, %v841
      %v848 = vmul.f32 %v601, %v841
      %v849 = vmul.f32 %v606, %v841
      %v850 = vmul.f32 %v609, %v841
      %v851 = vmul.f32 %v614, %v841
      %v852 = vmul.f32 %v617, %v841
      %v853 = vmul.f32 %v622, %v841
      %v854 = vmul.f32 %v625, %v841
      %v855 = vmul.f32 %v630, %v841
      %v856 = vmul.f32 %v633, %v841
      %v857 = vmul.f32 %v638, %v841
      %v858 = vmul.f32 %v641, %v841
      %v859 = vmul.f32 %v646, %v841
      %v860 = vmul.f32 %v649, %v841
      %v861 = vmul.f32 %v654, %v841
      %v862 = vmul.f32 %v657, %v841
      %v863 = vmul.f32 %v662, %v841
      %v864 = vmul.f32 %v665, %v841
      %v865 = vmul.f32 %v670, %v841
      %v866 = vmul.f32 %v673, %v841
      %v867 = vmul.f32 %v678, %v841
      %v868 = vmul.f32 %v681, %v841
      %v869 = vmul.f32 %v686, %v841
      %v870 = vmul.f32 %v689, %v841
      %v871 = vmul.f32 %v694, %v841
      %v872 = vmul.f32 %v697, %v841
      %v873 = vmul.f32 %v702, %v841
      %v874 = vmul.f32 %v705, %v841
      %v875 = vmul.f32 %v710, %v841
      %v876 = vmul.f32 %v713, %v841
      %v877 = vmul.f32 %v718, %v841
      %v878 = vmul.f32 %v721, %v841
      %v879 = vmul.f32 %v726, %v841
      %v880 = vmul.f32 %v729, %v841
      %v881 = vmul.f32 %v734, %v841
      %v882 = vmul.f32 %v737, %v841
      %v883 = vmul.f32 %v742, %v841
      %v884 = vmul.f32 %v745, %v841
      %v885 = vmul.f32 %v750, %v841
      %v886 = vmul.f32 %v753, %v841
      %v887 = vmul.f32 %v758, %v841
      %v888 = vmul.f32 %v761, %v841
      %v889 = vmul.f32 %v766, %v841
      %v890 = vmul.f32 %v769, %v841
      %v891 = vmul.f32 %v774, %v841
      %v892 = vmul.f32 %v777, %v841
      %v893 = vmul.f32 %v782, %v841
      %v894 = vmul.f32 %v785, %v841
      %v895 = vmul.f32 %v790, %v841
      %v896 = vmul.f32 %v793, %v841
      %v897 = vmul.f32 %v798, %v841
      %v898 = vmul.f32 %v801, %v841
      %v899 = vmul.f32 %v806, %v841
      %v900 = vmul.f32 %v809, %v841
      %v901 = vmul.f32 %v814, %v841
      %v902 = vmul.f32 %v817, %v841
      %v903 = vmul.f32 %v822, %v841
      %v904 = vmul.f32 %v825, %v841
      %v905 = vmul.f32 %v830, %v841
      %v906 = vmul.f32 %v833, %v841
      %v907 = vld [vmem:[%s3] sm:$0x1]
      %v909 = vlaneseq
      %v910 = vshrl.u32 %v909, 7
      %v911 = vsub.s32 0, %v910
      %v912 = vrot.slane %v907, %v911
      %v914 = vadd.f32 %v843, %v912
      %v915 = vadd.f32 %v844, %v912
      %v916 = vadd.f32 %v845, %v912
      %v917 = vadd.f32 %v846, %v912
      %v918 = vadd.f32 %v847, %v912
      %v919 = vadd.f32 %v848, %v912
      %v920 = vadd.f32 %v849, %v912
      %v921 = vadd.f32 %v850, %v912
      %v922 = vadd.f32 %v851, %v912
      %v923 = vadd.f32 %v852, %v912
      %v924 = vadd.f32 %v853, %v912
      %v925 = vadd.f32 %v854, %v912
      %v926 = vadd.f32 %v855, %v912
      %v927 = vadd.f32 %v856, %v912
      %v928 = vadd.f32 %v857, %v912
      %v929 = vadd.f32 %v858, %v912
      %v930 = vadd.f32 %v859, %v912
      %v931 = vadd.f32 %v860, %v912
      %v932 = vadd.f32 %v861, %v912
      %v933 = vadd.f32 %v862, %v912
      %v934 = vadd.f32 %v863, %v912
      %v935 = vadd.f32 %v864, %v912
      %v936 = vadd.f32 %v865, %v912
      %v937 = vadd.f32 %v866, %v912
      %v938 = vadd.f32 %v867, %v912
      %v939 = vadd.f32 %v868, %v912
      %v940 = vadd.f32 %v869, %v912
      %v941 = vadd.f32 %v870, %v912
      %v942 = vadd.f32 %v871, %v912
      %v943 = vadd.f32 %v872, %v912
      %v944 = vadd.f32 %v873, %v912
      %v945 = vadd.f32 %v874, %v912
      %v946 = vadd.f32 %v875, %v912
      %v947 = vadd.f32 %v876, %v912
      %v948 = vadd.f32 %v877, %v912
      %v949 = vadd.f32 %v878, %v912
      %v950 = vadd.f32 %v879, %v912
      %v951 = vadd.f32 %v880, %v912
      %v952 = vadd.f32 %v881, %v912
      %v953 = vadd.f32 %v882, %v912
      %v954 = vadd.f32 %v883, %v912
      %v955 = vadd.f32 %v884, %v912
      %v956 = vadd.f32 %v885, %v912
      %v957 = vadd.f32 %v886, %v912
      %v958 = vadd.f32 %v887, %v912
      %v959 = vadd.f32 %v888, %v912
      %v960 = vadd.f32 %v889, %v912
      %v961 = vadd.f32 %v890, %v912
      %v962 = vadd.f32 %v891, %v912
      %v963 = vadd.f32 %v892, %v912
      %v964 = vadd.f32 %v893, %v912
      %v965 = vadd.f32 %v894, %v912
      %v966 = vadd.f32 %v895, %v912
      %v967 = vadd.f32 %v896, %v912
      %v968 = vadd.f32 %v897, %v912
      %v969 = vadd.f32 %v898, %v912
      %v970 = vadd.f32 %v899, %v912
      %v971 = vadd.f32 %v900, %v912
      %v972 = vadd.f32 %v901, %v912
      %v973 = vadd.f32 %v902, %v912
      %v974 = vadd.f32 %v903, %v912
      %v975 = vadd.f32 %v904, %v912
      %v976 = vadd.f32 %v905, %v912
      %v977 = vadd.f32 %v906, %v912
      %v978 = vmax.f32 %v914, 0.0
      %v979 = vmax.f32 %v915, 0.0
      %v980 = vmax.f32 %v916, 0.0
      %v981 = vmax.f32 %v917, 0.0
      %v982 = vmax.f32 %v918, 0.0
      %v983 = vmax.f32 %v919, 0.0
      %v984 = vmax.f32 %v920, 0.0
      %v985 = vmax.f32 %v921, 0.0
      %v986 = vmax.f32 %v922, 0.0
      %v987 = vmax.f32 %v923, 0.0
      %v988 = vmax.f32 %v924, 0.0
      %v989 = vmax.f32 %v925, 0.0
      %v990 = vmax.f32 %v926, 0.0
      %v991 = vmax.f32 %v927, 0.0
      %v992 = vmax.f32 %v928, 0.0
      %v993 = vmax.f32 %v929, 0.0
      %v994 = vmax.f32 %v930, 0.0
      %v995 = vmax.f32 %v931, 0.0
      %v996 = vmax.f32 %v932, 0.0
      %v997 = vmax.f32 %v933, 0.0
      %v998 = vmax.f32 %v934, 0.0
      %v999 = vmax.f32 %v935, 0.0
      %v1000 = vmax.f32 %v936, 0.0
      %v1001 = vmax.f32 %v937, 0.0
      %v1002 = vmax.f32 %v938, 0.0
      %v1003 = vmax.f32 %v939, 0.0
      %v1004 = vmax.f32 %v940, 0.0
      %v1005 = vmax.f32 %v941, 0.0
      %v1006 = vmax.f32 %v942, 0.0
      %v1007 = vmax.f32 %v943, 0.0
      %v1008 = vmax.f32 %v944, 0.0
      %v1009 = vmax.f32 %v945, 0.0
      %v1010 = vmax.f32 %v946, 0.0
      %v1011 = vmax.f32 %v947, 0.0
      %v1012 = vmax.f32 %v948, 0.0
      %v1013 = vmax.f32 %v949, 0.0
      %v1014 = vmax.f32 %v950, 0.0
      %v1015 = vmax.f32 %v951, 0.0
      %v1016 = vmax.f32 %v952, 0.0
      %v1017 = vmax.f32 %v953, 0.0
      %v1018 = vmax.f32 %v954, 0.0
      %v1019 = vmax.f32 %v955, 0.0
      %v1020 = vmax.f32 %v956, 0.0
      %v1021 = vmax.f32 %v957, 0.0
      %v1022 = vmax.f32 %v958, 0.0
      %v1023 = vmax.f32 %v959, 0.0
      %v1024 = vmax.f32 %v960, 0.0
      %v1025 = vmax.f32 %v961, 0.0
      %v1026 = vmax.f32 %v962, 0.0
      %v1027 = vmax.f32 %v963, 0.0
      %v1028 = vmax.f32 %v964, 0.0
      %v1029 = vmax.f32 %v965, 0.0
      %v1030 = vmax.f32 %v966, 0.0
      %v1031 = vmax.f32 %v967, 0.0
      %v1032 = vmax.f32 %v968, 0.0
      %v1033 = vmax.f32 %v969, 0.0
      %v1034 = vmax.f32 %v970, 0.0
      %v1035 = vmax.f32 %v971, 0.0
      %v1036 = vmax.f32 %v972, 0.0
      %v1037 = vmax.f32 %v973, 0.0
      %v1038 = vmax.f32 %v974, 0.0
      %v1039 = vmax.f32 %v975, 0.0
      %v1040 = vmax.f32 %v976, 0.0
      %v1041 = vmax.f32 %v977, 0.0
      %vm1042 = vcmask 64512
      %1043 = vst.msk [vmem:[%s199] sm:$0xff] %vm1042, %v978
      %1044 = vst.msk [vmem:[%s199 + $0x8] sm:$0xff] %vm1042, %v979
      %1045 = vst.msk [vmem:[%s199 + $0x10] sm:$0xff] %vm1042, %v980
      %1046 = vst.msk [vmem:[%s199 + $0x18] sm:$0xff] %vm1042, %v981
      %1047 = vst.msk [vmem:[%s199 + $0x20] sm:$0xff] %vm1042, %v982
      %1048 = vst.msk [vmem:[%s199 + $0x28] sm:$0xff] %vm1042, %v983
      %1049 = vst.msk [vmem:[%s199 + $0x30] sm:$0xff] %vm1042, %v984
      %1050 = vst.msk [vmem:[%s199 + $0x38] sm:$0xff] %vm1042, %v985
      %1051 = vst.msk [vmem:[%s199 + $0x40] sm:$0xff] %vm1042, %v986
      %1052 = vst.msk [vmem:[%s199 + $0x48] sm:$0xff] %vm1042, %v987
      %1053 = vst.msk [vmem:[%s199 + $0x50] sm:$0xff] %vm1042, %v988
      %1054 = vst.msk [vmem:[%s199 + $0x58] sm:$0xff] %vm1042, %v989
      %1055 = vst.msk [vmem:[%s199 + $0x60] sm:$0xff] %vm1042, %v990
      %1056 = vst.msk [vmem:[%s199 + $0x68] sm:$0xff] %vm1042, %v991
      %1057 = vst.msk [vmem:[%s199 + $0x70] sm:$0xff] %vm1042, %v992
      %1058 = vst.msk [vmem:[%s199 + $0x78] sm:$0xff] %vm1042, %v993
      %1059 = vst.msk [vmem:[%s199 + $0x80] sm:$0xff] %vm1042, %v994
      %1060 = vst.msk [vmem:[%s199 + $0x88] sm:$0xff] %vm1042, %v995
      %1061 = vst.msk [vmem:[%s199 + $0x90] sm:$0xff] %vm1042, %v996
      %1062 = vst.msk [vmem:[%s199 + $0x98] sm:$0xff] %vm1042, %v997
      %1063 = vst.msk [vmem:[%s199 + $0xa0] sm:$0xff] %vm1042, %v998
      %1064 = vst.msk [vmem:[%s199 + $0xa8] sm:$0xff] %vm1042, %v999
      %1065 = vst.msk [vmem:[%s199 + $0xb0] sm:$0xff] %vm1042, %v1000
      %1066 = vst.msk [vmem:[%s199 + $0xb8] sm:$0xff] %vm1042, %v1001
      %1067 = vst.msk [vmem:[%s199 + $0xc0] sm:$0xff] %vm1042, %v1002
      %1068 = vst.msk [vmem:[%s199 + $0xc8] sm:$0xff] %vm1042, %v1003
      %1069 = vst.msk [vmem:[%s199 + $0xd0] sm:$0xff] %vm1042, %v1004
      %1070 = vst.msk [vmem:[%s199 + $0xd8] sm:$0xff] %vm1042, %v1005
      %1071 = vst.msk [vmem:[%s199 + $0xe0] sm:$0xff] %vm1042, %v1006
      %1072 = vst.msk [vmem:[%s199 + $0xe8] sm:$0xff] %vm1042, %v1007
      %1073 = vst.msk [vmem:[%s199 + $0xf0] sm:$0xff] %vm1042, %v1008
      %1074 = vst.msk [vmem:[%s199 + $0xf8] sm:$0xff] %vm1042, %v1009
      %1075 = vst.msk [vmem:[%s199 + $0x100] sm:$0xff] %vm1042, %v1010
      %1076 = vst.msk [vmem:[%s199 + $0x108] sm:$0xff] %vm1042, %v1011
      %1077 = vst.msk [vmem:[%s199 + $0x110] sm:$0xff] %vm1042, %v1012
      %1078 = vst.msk [vmem:[%s199 + $0x118] sm:$0xff] %vm1042, %v1013
      %1079 = vst.msk [vmem:[%s199 + $0x120] sm:$0xff] %vm1042, %v1014
      %1080 = vst.msk [vmem:[%s199 + $0x128] sm:$0xff] %vm1042, %v1015
      %1081 = vst.msk [vmem:[%s199 + $0x130] sm:$0xff] %vm1042, %v1016
      %1082 = vst.msk [vmem:[%s199 + $0x138] sm:$0xff] %vm1042, %v1017
      %1083 = vst.msk [vmem:[%s199 + $0x140] sm:$0xff] %vm1042, %v1018
      %1084 = vst.msk [vmem:[%s199 + $0x148] sm:$0xff] %vm1042, %v1019
      %1085 = vst.msk [vmem:[%s199 + $0x150] sm:$0xff] %vm1042, %v1020
      %1086 = vst.msk [vmem:[%s199 + $0x158] sm:$0xff] %vm1042, %v1021
      %1087 = vst.msk [vmem:[%s199 + $0x160] sm:$0xff] %vm1042, %v1022
      %1088 = vst.msk [vmem:[%s199 + $0x168] sm:$0xff] %vm1042, %v1023
      %1089 = vst.msk [vmem:[%s199 + $0x170] sm:$0xff] %vm1042, %v1024
      %1090 = vst.msk [vmem:[%s199 + $0x178] sm:$0xff] %vm1042, %v1025
      %1091 = vst.msk [vmem:[%s199 + $0x180] sm:$0xff] %vm1042, %v1026
      %1092 = vst.msk [vmem:[%s199 + $0x188] sm:$0xff] %vm1042, %v1027
      %1093 = vst.msk [vmem:[%s199 + $0x190] sm:$0xff] %vm1042, %v1028
      %1094 = vst.msk [vmem:[%s199 + $0x198] sm:$0xff] %vm1042, %v1029
      %1095 = vst.msk [vmem:[%s199 + $0x1a0] sm:$0xff] %vm1042, %v1030
      %1096 = vst.msk [vmem:[%s199 + $0x1a8] sm:$0xff] %vm1042, %v1031
      %1097 = vst.msk [vmem:[%s199 + $0x1b0] sm:$0xff] %vm1042, %v1032
      %1098 = vst.msk [vmem:[%s199 + $0x1b8] sm:$0xff] %vm1042, %v1033
      %1099 = vst.msk [vmem:[%s199 + $0x1c0] sm:$0xff] %vm1042, %v1034
      %1100 = vst.msk [vmem:[%s199 + $0x1c8] sm:$0xff] %vm1042, %v1035
      %1101 = vst.msk [vmem:[%s199 + $0x1d0] sm:$0xff] %vm1042, %v1036
      %1102 = vst.msk [vmem:[%s199 + $0x1d8] sm:$0xff] %vm1042, %v1037
      %1103 = vst.msk [vmem:[%s199 + $0x1e0] sm:$0xff] %vm1042, %v1038
      %1104 = vst.msk [vmem:[%s199 + $0x1e8] sm:$0xff] %vm1042, %v1039
      %1105 = vst.msk [vmem:[%s199 + $0x1f0] sm:$0xff] %vm1042, %v1040
      %1106 = vst.msk [vmem:[%s199 + $0x1f8] sm:$0xff] %vm1042, %v1041
      %s1107 = smul.u32 64, %s15
      %p1108 = scmp.lt.s32.totalorder %s1107, 127
      %s1109 = scalar_select %p1108, %s1107, 127
      %s1110 = smul.addr %s1109, 8
      %s1111 = scalar_lea.vmem %s4, %s1110
      // Predicated region
      $region37: #{sphere_block_3d.3} parent=35 // pred_check
        %p1112 = pneg %p122
      $region38: #{sphere_block_3d.3} parent=35 // pred_check_branch
        %1114 = sbr.rel (%p1112) target = $region40
      $region39: #{sphere_block_3d.3} parent=35 // pred_region
        %s1115 = smul.u32 64, %s15
      $region40: #{sphere_block_3d.3} parent=35 // pred_fallthru
        _
    $region36: #{sphere_block_3d.3} parent=5 // pred_fallthru
      _
    %p1116 = scmp.le.s32.totalorder 2, %s10
    // Predicated region
    $region41: #{sphere_block_3d.3} parent=5 // pred_check
      %p1117 = pneg %p1116
    $region42: #{sphere_block_3d.3} parent=5 // pred_check_branch
      %1119 = sbr.rel (%p1117) target = $region44
    $region43: #{sphere_block_3d.3} parent=5 // pred_region
      %s1120 = ssub.s32 %s10, 2
      // Predicated region
      $region45: #{sphere_block_3d.3} parent=43 // pred_check
        %p1121 = pneg %p128
      $region46: #{sphere_block_3d.3} parent=43 // pred_check_branch
        %1123 = sbr.rel (%p1121) target = $region48
      $region47: #{sphere_block_3d.3} parent=43 // pred_region
        %s1124 = smul.u32 64, %s16
        %p1125 = scmp.lt.s32.totalorder %s1124, 127
        %s1126 = scalar_select %p1125, %s1124, 127
        %s1127 = smul.addr %s1126, 8
        %s1128 = scalar_lea.vmem %s4, %s1127
      $region48: #{sphere_block_3d.3} parent=43 // pred_fallthru
        _
    $region44: #{sphere_block_3d.3} parent=5 // pred_fallthru
      _
  $region6: #{sphere_block_3d.3} parent=0 // loop_footer
    %s14 = sadd.s32 1, %s10
  $region7: #{sphere_block_3d.3} parent=0 // loop_footer_branch
    %9 = sbr.rel target = $region3
  $region8: #{sphere_block_3d.3} parent=0 // loop_exit
    _

</llo_original>
